<compile_context>
chip_gen: v7x
topology: tpu7x:2x2x1
jax: 0.10.0
libtpu: 0.0.40
codegen_flags: <defaults>
</compile_context>

<pallas_src>
import math
import numpy as np
import jax
import jax.numpy as jnp
from jax.experimental import pallas as pl
from jax.experimental.pallas import tpu as pltpu


def decoder_kernel(x_ref, h0_ref, w_ref, b_ref, wout_ref, neg_ref,
                   out_ref, hid_ref):
    """Single invocation: full GRU recurrence + output head.

    x_ref:    (T*Bp, D_in)       time-major, batch-padded decoder input
    h0_ref:   (Bp, H)            initial hidden state (rows >= B are padding)
    w_ref:    (D_in+H, 3H)       [w_ih ; w_hh] stacked
    b_ref:    (1, 4H)            [b_ih + b_hh(r,z) cols | b_hh(n) col]
    wout_ref: (H, D_out)         output projection
    neg_ref:  (T*Bp, D_out)      precomputed additive mask (+ b_out folded in)
    out_ref:  (T*Bp, D_out)      masked logits
    hid_ref:  (Bp, H)            final hidden state
    """
    TBp, D_in = x_ref.shape
    Bp, H = h0_ref.shape
    T = TBp // Bp

    w_all = w_ref[...]
    w_ih = w_all[0:D_in, :]                 # (D_in, 3H)  static slice
    w_hh = w_all[D_in:D_in + H, :]          # (H,   3H)

    b_all = b_ref[...]                      # (1, 4H)
    # Hoisted input projection with the folded bias (b_ih + b_hh for r/z).
    gi_all = jnp.dot(x_ref[...], w_ih,
                     preferred_element_type=jnp.float32) + b_all[:, 0:3 * H]
    # Hoisted broadcast of the n-gate hidden bias (scaled by r per step).
    bhh_n = jnp.broadcast_to(b_all[:, 3 * H:4 * H], (Bp, H))

    # Sequential GRU recurrence, fully unrolled (static trip count / slices).
    # PyTorch GRU gate order: r, z, n.
    h = h0_ref[...]                                        # (Bp, H)
    th_steps = []
    for t in range(T):
        gi = gi_all[t * Bp:(t + 1) * Bp, :]                # (Bp, 3H) full tile
        gh = jnp.dot(h, w_hh, preferred_element_type=jnp.float32)
        r = jax.nn.sigmoid(gi[:, 0:H] + gh[:, 0:H])
        z = jax.nn.sigmoid(gi[:, H:2 * H] + gh[:, H:2 * H])
        n = jnp.tanh(gi[:, 2 * H:3 * H] + r * (gh[:, 2 * H:3 * H] + bhh_n))
        h = (1.0 - z) * n + z * h
        th_steps.append(jnp.tanh(h))       # EUP work overlaps next iteration

    hid_ref[...] = h                        # written exactly once

    # Output head: one (T*Bp,H)x(H,D_out) matmul + one add of the precomputed
    # additive mask (which already contains b_out and -inf at masked columns).
    th_all = jnp.concatenate(th_steps, axis=0)             # (T*Bp, H), in regs
    out_ref[...] = jnp.dot(th_all, wout_ref[...],
                           preferred_element_type=jnp.float32) + neg_ref[...]


def decoder_forward(x, hidden, mask, params):
    """x: (T, B, D_in)  hidden: (1, B, H)  mask: (T, D_out)
       -> (out (T, B, D_out), hidden (1, B, H))"""
    T, B, D_in = x.shape
    H = hidden.shape[-1]
    D_out = params["w_out"].shape[-1]
    Bp = 8  # pad batch to one f32 sublane tile

    # --- Layout plumbing only (no compute hoisted out of the kernel) ---
    x_p = jnp.zeros((T, Bp, D_in), jnp.float32).at[:, :B, :].set(
        x.astype(jnp.float32))
    x_flat = x_p.reshape(T * Bp, D_in)
    h0_p = jnp.zeros((Bp, H), jnp.float32).at[:B, :].set(
        hidden.reshape(B, H).astype(jnp.float32))

    # Pack weights: [w_ih ; w_hh] -> one DMA.
    w_all = jnp.concatenate([params["w_ih"], params["w_hh"]], axis=0)

    # Pack biases: [b_ih + b_hh(r,z cols) | b_hh(n col)] -> one (1, 4H) DMA.
    b_gi = params["b_ih"] + jnp.concatenate(
        [params["b_hh"][:, :2 * H], jnp.zeros((1, H), jnp.float32)], axis=1)
    b_pack = jnp.concatenate([b_gi, params["b_hh"][:, 2 * H:3 * H]], axis=1)

    # Additive mask with b_out folded in: -inf where masked, b_out elsewhere
    # (matches masked_fill since the finite logits + (-inf) == -inf).
    neg = jnp.where(mask.astype(jnp.float32)[:, None, :] > 0.0,
                    -jnp.inf, 0.0)                              # (T, 1, D_out)
    neg = jnp.broadcast_to(neg, (T, Bp, D_out)) + params["b_out"]
    neg_flat = neg.reshape(T * Bp, D_out)

    vmem = pl.BlockSpec(memory_space=pltpu.MemorySpace.VMEM)

    out_flat, hid = pl.pallas_call(
        decoder_kernel,
        out_shape=(
            jax.ShapeDtypeStruct((T * Bp, D_out), jnp.float32),
            jax.ShapeDtypeStruct((Bp, H), jnp.float32),
        ),
        in_specs=[vmem] * 6,
        out_specs=(vmem, vmem),
    )(x_flat, h0_p, w_all, b_pack, params["w_out"], neg_flat)

    out = out_flat.reshape(T, Bp, D_out)[:, :B, :]
    return out, hid[:B, :].reshape(1, B, H)


def decoder_reference(x, hidden, mask, params):
    """Pure-JAX reference mirroring the PyTorch forward."""
    H = hidden.shape[-1]
    h0 = hidden[0]

    def step(h_prev, x_t):
        gi = x_t @ params["w_ih"] + params["b_ih"]
        gh = h_prev @ params["w_hh"] + params["b_hh"]
        r = jax.nn.sigmoid(gi[:, 0:H] + gh[:, 0:H])
        z = jax.nn.sigmoid(gi[:, H:2 * H] + gh[:, H:2 * H])
        n = jnp.tanh(gi[:, 2 * H:3 * H] + r * gh[:, 2 * H:3 * H])
        h = (1.0 - z) * n + z * h_prev
        return h, h

    h_last, outs = jax.lax.scan(step, h0, x)                  # outs: (T, B, H)
    y = jnp.tanh(outs) @ params["w_out"] + params["b_out"]    # (T, B, D_out)
    y = jnp.where(mask[:, None, :] > 0.0, -jnp.inf, y)
    return y, h_last[None]


def init_params(key, input_dim, hidden_dim, output_dim):
    """Deterministic synthetic init (same shapes as nn.GRU / nn.Linear, pre-transposed)."""
    ks = jax.random.split(key, 6)
    kg = 1.0 / math.sqrt(hidden_dim)
    u = lambda k, shape, b: jax.random.uniform(k, shape, jnp.float32, -b, b)
    return {
        "w_ih": u(ks[0], (input_dim, 3 * hidden_dim), kg),    # == weight_ih_l0.T
        "w_hh": u(ks[1], (hidden_dim, 3 * hidden_dim), kg),   # == weight_hh_l0.T
        "b_ih": u(ks[2], (1, 3 * hidden_dim), kg),
        "b_hh": u(ks[3], (1, 3 * hidden_dim), kg),
        "w_out": u(ks[4], (hidden_dim, output_dim), kg),      # == out.weight.T
        "b_out": u(ks[5], (1, output_dim), kg),
    }


if __name__ == "__main__":
    T, B = 8, 2                      # seq_len, batch
    D_IN, H, D_OUT = 16, 32, 16      # input_dim, hidden_dim, output_dim

    key = jax.random.PRNGKey(0)
    k_p, k_x, k_h, k_m = jax.random.split(key, 4)

    params = init_params(k_p, D_IN, H, D_OUT)
    x = jax.random.normal(k_x, (T, B, D_IN), jnp.float32)
    hidden = jax.random.normal(k_h, (1, B, H), jnp.float32)
    mask = (jax.random.uniform(k_m, (T, D_OUT)) > 0.7).astype(jnp.float32)

    out, hid = decoder_forward(x, hidden, mask, params)
    out = jax.block_until_ready(out)
    hid = jax.block_until_ready(hid)

    out_ref, hid_ref = decoder_reference(x, hidden, mask, params)
    assert np.allclose(np.asarray(out), np.asarray(out_ref), rtol=1e-5, atol=1e-5)
    assert np.allclose(np.asarray(hid), np.asarray(hid_ref), rtol=1e-5, atol=1e-5)

    print("KERNEL_OK")
</pallas_src>

<mosaic_0001>
module attributes {stable_mosaic.version = 11 : i64} {
  func.func @decoder_kernel(%arg0: memref<64x16xf32, #tpu.memory_space<vmem>>, %arg1: memref<8x32xf32, #tpu.memory_space<vmem>>, %arg2: memref<48x96xf32, #tpu.memory_space<vmem>>, %arg3: memref<1x128xf32, #tpu.memory_space<vmem>>, %arg4: memref<32x16xf32, #tpu.memory_space<vmem>>, %arg5: memref<64x16xf32, #tpu.memory_space<vmem>>, %arg6: memref<64x16xf32, #tpu.memory_space<vmem>>, %arg7: memref<8x32xf32, #tpu.memory_space<vmem>>) attributes {dimension_semantics = [], scalar_prefetch = 0 : i64, scratch_operands = 0 : i64, tpu.core_type = #tpu.core_type<tc>} {
    %c0 = arith.constant 0 : index
    %c0_0 = arith.constant 0 : index
    %0 = vector.load %arg2[%c0, %c0_0] : memref<48x96xf32, #tpu.memory_space<vmem>>, vector<48x96xf32>
    %1 = vector.extract_strided_slice %0 {offsets = [0, 0], sizes = [16, 96], strides = [1, 1]} : vector<48x96xf32> to vector<16x96xf32>
    %2 = vector.extract_strided_slice %0 {offsets = [16, 0], sizes = [32, 96], strides = [1, 1]} : vector<48x96xf32> to vector<32x96xf32>
    %c0_1 = arith.constant 0 : index
    %c0_2 = arith.constant 0 : index
    %3 = vector.load %arg3[%c0_1, %c0_2] : memref<1x128xf32, #tpu.memory_space<vmem>>, vector<1x128xf32>
    %c0_3 = arith.constant 0 : index
    %c0_4 = arith.constant 0 : index
    %4 = vector.load %arg0[%c0_3, %c0_4] : memref<64x16xf32, #tpu.memory_space<vmem>>, vector<64x16xf32>
    %cst = arith.constant dense<0.000000e+00> : vector<64x96xf32>
    %5 = tpu.matmul %4, %1, %cst {dimension_numbers = #tpu.dot_dimension_numbers<[1], [0], [0], [1], [0, 0, 1, 1], [], []>} : vector<64x16xf32>, vector<16x96xf32>, vector<64x96xf32> -> vector<64x96xf32>
    %6 = vector.extract_strided_slice %3 {offsets = [0, 0], sizes = [1, 96], strides = [1, 1]} : vector<1x128xf32> to vector<1x96xf32>
    %7 = vector.broadcast %6 : vector<1x96xf32> to vector<64x96xf32>
    %8 = arith.addf %5, %7 : vector<64x96xf32>
    %9 = vector.extract_strided_slice %3 {offsets = [0, 96], sizes = [1, 32], strides = [1, 1]} : vector<1x128xf32> to vector<1x32xf32>
    %10 = vector.shape_cast %9 : vector<1x32xf32> to vector<1x32xf32>
    %11 = vector.broadcast %10 : vector<1x32xf32> to vector<8x32xf32>
    %c0_5 = arith.constant 0 : index
    %c0_6 = arith.constant 0 : index
    %12 = vector.load %arg1[%c0_5, %c0_6] : memref<8x32xf32, #tpu.memory_space<vmem>>, vector<8x32xf32>
    %13 = vector.extract_strided_slice %8 {offsets = [0, 0], sizes = [8, 96], strides = [1, 1]} : vector<64x96xf32> to vector<8x96xf32>
    %cst_7 = arith.constant dense<0.000000e+00> : vector<8x96xf32>
    %14 = tpu.matmul %12, %2, %cst_7 {dimension_numbers = #tpu.dot_dimension_numbers<[1], [0], [0], [1], [0, 0, 1, 1], [], []>} : vector<8x32xf32>, vector<32x96xf32>, vector<8x96xf32> -> vector<8x96xf32>
    %15 = vector.extract_strided_slice %13 {offsets = [0, 0], sizes = [8, 32], strides = [1, 1]} : vector<8x96xf32> to vector<8x32xf32>
    %16 = vector.extract_strided_slice %14 {offsets = [0, 0], sizes = [8, 32], strides = [1, 1]} : vector<8x96xf32> to vector<8x32xf32>
    %17 = arith.addf %15, %16 : vector<8x32xf32>
    %18 = arith.negf %17 : vector<8x32xf32>
    %19 = math.exp %18 : vector<8x32xf32>
    %cst_8 = arith.constant 1.000000e+00 : f32
    %20 = vector.broadcast %cst_8 : f32 to vector<8x32xf32>
    %21 = arith.addf %20, %19 : vector<8x32xf32>
    %22 = arith.divf %20, %21 : vector<8x32xf32>
    %23 = vector.extract_strided_slice %13 {offsets = [0, 32], sizes = [8, 32], strides = [1, 1]} : vector<8x96xf32> to vector<8x32xf32>
    %24 = vector.extract_strided_slice %14 {offsets = [0, 32], sizes = [8, 32], strides = [1, 1]} : vector<8x96xf32> to vector<8x32xf32>
    %25 = arith.addf %23, %24 : vector<8x32xf32>
    %26 = arith.negf %25 : vector<8x32xf32>
    %27 = math.exp %26 : vector<8x32xf32>
    %cst_9 = arith.constant 1.000000e+00 : f32
    %28 = vector.broadcast %cst_9 : f32 to vector<8x32xf32>
    %29 = arith.addf %28, %27 : vector<8x32xf32>
    %30 = arith.divf %28, %29 : vector<8x32xf32>
    %31 = vector.extract_strided_slice %13 {offsets = [0, 64], sizes = [8, 32], strides = [1, 1]} : vector<8x96xf32> to vector<8x32xf32>
    %32 = vector.extract_strided_slice %14 {offsets = [0, 64], sizes = [8, 32], strides = [1, 1]} : vector<8x96xf32> to vector<8x32xf32>
    %33 = arith.addf %32, %11 : vector<8x32xf32>
    %34 = arith.mulf %22, %33 : vector<8x32xf32>
    %35 = arith.addf %31, %34 : vector<8x32xf32>
    %36 = math.tanh %35 : vector<8x32xf32>
    %cst_10 = arith.constant 1.000000e+00 : f32
    %37 = vector.broadcast %cst_10 : f32 to vector<8x32xf32>
    %38 = arith.subf %37, %30 : vector<8x32xf32>
    %39 = arith.mulf %38, %36 : vector<8x32xf32>
    %40 = arith.mulf %30, %12 : vector<8x32xf32>
    %41 = arith.addf %39, %40 : vector<8x32xf32>
    %42 = math.tanh %41 : vector<8x32xf32>
    %43 = vector.extract_strided_slice %8 {offsets = [8, 0], sizes = [8, 96], strides = [1, 1]} : vector<64x96xf32> to vector<8x96xf32>
    %cst_11 = arith.constant dense<0.000000e+00> : vector<8x96xf32>
    %44 = tpu.matmul %41, %2, %cst_11 {dimension_numbers = #tpu.dot_dimension_numbers<[1], [0], [0], [1], [0, 0, 1, 1], [], []>} : vector<8x32xf32>, vector<32x96xf32>, vector<8x96xf32> -> vector<8x96xf32>
    %45 = vector.extract_strided_slice %43 {offsets = [0, 0], sizes = [8, 32], strides = [1, 1]} : vector<8x96xf32> to vector<8x32xf32>
    %46 = vector.extract_strided_slice %44 {offsets = [0, 0], sizes = [8, 32], strides = [1, 1]} : vector<8x96xf32> to vector<8x32xf32>
    %47 = arith.addf %45, %46 : vector<8x32xf32>
    %48 = arith.negf %47 : vector<8x32xf32>
    %49 = math.exp %48 : vector<8x32xf32>
    %cst_12 = arith.constant 1.000000e+00 : f32
    %50 = vector.broadcast %cst_12 : f32 to vector<8x32xf32>
    %51 = arith.addf %50, %49 : vector<8x32xf32>
    %52 = arith.divf %50, %51 : vector<8x32xf32>
    %53 = vector.extract_strided_slice %43 {offsets = [0, 32], sizes = [8, 32], strides = [1, 1]} : vector<8x96xf32> to vector<8x32xf32>
    %54 = vector.extract_strided_slice %44 {offsets = [0, 32], sizes = [8, 32], strides = [1, 1]} : vector<8x96xf32> to vector<8x32xf32>
    %55 = arith.addf %53, %54 : vector<8x32xf32>
    %56 = arith.negf %55 : vector<8x32xf32>
    %57 = math.exp %56 : vector<8x32xf32>
    %cst_13 = arith.constant 1.000000e+00 : f32
    %58 = vector.broadcast %cst_13 : f32 to vector<8x32xf32>
    %59 = arith.addf %58, %57 : vector<8x32xf32>
    %60 = arith.divf %58, %59 : vector<8x32xf32>
    %61 = vector.extract_strided_slice %43 {offsets = [0, 64], sizes = [8, 32], strides = [1, 1]} : vector<8x96xf32> to vector<8x32xf32>
    %62 = vector.extract_strided_slice %44 {offsets = [0, 64], sizes = [8, 32], strides = [1, 1]} : vector<8x96xf32> to vector<8x32xf32>
    %63 = arith.addf %62, %11 : vector<8x32xf32>
    %64 = arith.mulf %52, %63 : vector<8x32xf32>
    %65 = arith.addf %61, %64 : vector<8x32xf32>
    %66 = math.tanh %65 : vector<8x32xf32>
    %cst_14 = arith.constant 1.000000e+00 : f32
    %67 = vector.broadcast %cst_14 : f32 to vector<8x32xf32>
    %68 = arith.subf %67, %60 : vector<8x32xf32>
    %69 = arith.mulf %68, %66 : vector<8x32xf32>
    %70 = arith.mulf %60, %41 : vector<8x32xf32>
    %71 = arith.addf %69, %70 : vector<8x32xf32>
    %72 = math.tanh %71 : vector<8x32xf32>
    %73 = vector.extract_strided_slice %8 {offsets = [16, 0], sizes = [8, 96], strides = [1, 1]} : vector<64x96xf32> to vector<8x96xf32>
    %cst_15 = arith.constant dense<0.000000e+00> : vector<8x96xf32>
    %74 = tpu.matmul %71, %2, %cst_15 {dimension_numbers = #tpu.dot_dimension_numbers<[1], [0], [0], [1], [0, 0, 1, 1], [], []>} : vector<8x32xf32>, vector<32x96xf32>, vector<8x96xf32> -> vector<8x96xf32>
    %75 = vector.extract_strided_slice %73 {offsets = [0, 0], sizes = [8, 32], strides = [1, 1]} : vector<8x96xf32> to vector<8x32xf32>
    %76 = vector.extract_strided_slice %74 {offsets = [0, 0], sizes = [8, 32], strides = [1, 1]} : vector<8x96xf32> to vector<8x32xf32>
    %77 = arith.addf %75, %76 : vector<8x32xf32>
    %78 = arith.negf %77 : vector<8x32xf32>
    %79 = math.exp %78 : vector<8x32xf32>
    %cst_16 = arith.constant 1.000000e+00 : f32
    %80 = vector.broadcast %cst_16 : f32 to vector<8x32xf32>
    %81 = arith.addf %80, %79 : vector<8x32xf32>
    %82 = arith.divf %80, %81 : vector<8x32xf32>
    %83 = vector.extract_strided_slice %73 {offsets = [0, 32], sizes = [8, 32], strides = [1, 1]} : vector<8x96xf32> to vector<8x32xf32>
    %84 = vector.extract_strided_slice %74 {offsets = [0, 32], sizes = [8, 32], strides = [1, 1]} : vector<8x96xf32> to vector<8x32xf32>
    %85 = arith.addf %83, %84 : vector<8x32xf32>
    %86 = arith.negf %85 : vector<8x32xf32>
    %87 = math.exp %86 : vector<8x32xf32>
    %cst_17 = arith.constant 1.000000e+00 : f32
    %88 = vector.broadcast %cst_17 : f32 to vector<8x32xf32>
    %89 = arith.addf %88, %87 : vector<8x32xf32>
    %90 = arith.divf %88, %89 : vector<8x32xf32>
    %91 = vector.extract_strided_slice %73 {offsets = [0, 64], sizes = [8, 32], strides = [1, 1]} : vector<8x96xf32> to vector<8x32xf32>
    %92 = vector.extract_strided_slice %74 {offsets = [0, 64], sizes = [8, 32], strides = [1, 1]} : vector<8x96xf32> to vector<8x32xf32>
    %93 = arith.addf %92, %11 : vector<8x32xf32>
    %94 = arith.mulf %82, %93 : vector<8x32xf32>
    %95 = arith.addf %91, %94 : vector<8x32xf32>
    %96 = math.tanh %95 : vector<8x32xf32>
    %cst_18 = arith.constant 1.000000e+00 : f32
    %97 = vector.broadcast %cst_18 : f32 to vector<8x32xf32>
    %98 = arith.subf %97, %90 : vector<8x32xf32>
    %99 = arith.mulf %98, %96 : vector<8x32xf32>
    %100 = arith.mulf %90, %71 : vector<8x32xf32>
    %101 = arith.addf %99, %100 : vector<8x32xf32>
    %102 = math.tanh %101 : vector<8x32xf32>
    %103 = vector.extract_strided_slice %8 {offsets = [24, 0], sizes = [8, 96], strides = [1, 1]} : vector<64x96xf32> to vector<8x96xf32>
    %cst_19 = arith.constant dense<0.000000e+00> : vector<8x96xf32>
    %104 = tpu.matmul %101, %2, %cst_19 {dimension_numbers = #tpu.dot_dimension_numbers<[1], [0], [0], [1], [0, 0, 1, 1], [], []>} : vector<8x32xf32>, vector<32x96xf32>, vector<8x96xf32> -> vector<8x96xf32>
    %105 = vector.extract_strided_slice %103 {offsets = [0, 0], sizes = [8, 32], strides = [1, 1]} : vector<8x96xf32> to vector<8x32xf32>
    %106 = vector.extract_strided_slice %104 {offsets = [0, 0], sizes = [8, 32], strides = [1, 1]} : vector<8x96xf32> to vector<8x32xf32>
    %107 = arith.addf %105, %106 : vector<8x32xf32>
    %108 = arith.negf %107 : vector<8x32xf32>
    %109 = math.exp %108 : vector<8x32xf32>
    %cst_20 = arith.constant 1.000000e+00 : f32
    %110 = vector.broadcast %cst_20 : f32 to vector<8x32xf32>
    %111 = arith.addf %110, %109 : vector<8x32xf32>
    %112 = arith.divf %110, %111 : vector<8x32xf32>
    %113 = vector.extract_strided_slice %103 {offsets = [0, 32], sizes = [8, 32], strides = [1, 1]} : vector<8x96xf32> to vector<8x32xf32>
    %114 = vector.extract_strided_slice %104 {offsets = [0, 32], sizes = [8, 32], strides = [1, 1]} : vector<8x96xf32> to vector<8x32xf32>
    %115 = arith.addf %113, %114 : vector<8x32xf32>
    %116 = arith.negf %115 : vector<8x32xf32>
    %117 = math.exp %116 : vector<8x32xf32>
    %cst_21 = arith.constant 1.000000e+00 : f32
    %118 = vector.broadcast %cst_21 : f32 to vector<8x32xf32>
    %119 = arith.addf %118, %117 : vector<8x32xf32>
    %120 = arith.divf %118, %119 : vector<8x32xf32>
    %121 = vector.extract_strided_slice %103 {offsets = [0, 64], sizes = [8, 32], strides = [1, 1]} : vector<8x96xf32> to vector<8x32xf32>
    %122 = vector.extract_strided_slice %104 {offsets = [0, 64], sizes = [8, 32], strides = [1, 1]} : vector<8x96xf32> to vector<8x32xf32>
    %123 = arith.addf %122, %11 : vector<8x32xf32>
    %124 = arith.mulf %112, %123 : vector<8x32xf32>
    %125 = arith.addf %121, %124 : vector<8x32xf32>
    %126 = math.tanh %125 : vector<8x32xf32>
    %cst_22 = arith.constant 1.000000e+00 : f32
    %127 = vector.broadcast %cst_22 : f32 to vector<8x32xf32>
    %128 = arith.subf %127, %120 : vector<8x32xf32>
    %129 = arith.mulf %128, %126 : vector<8x32xf32>
    %130 = arith.mulf %120, %101 : vector<8x32xf32>
    %131 = arith.addf %129, %130 : vector<8x32xf32>
    %132 = math.tanh %131 : vector<8x32xf32>
    %133 = vector.extract_strided_slice %8 {offsets = [32, 0], sizes = [8, 96], strides = [1, 1]} : vector<64x96xf32> to vector<8x96xf32>
    %cst_23 = arith.constant dense<0.000000e+00> : vector<8x96xf32>
    %134 = tpu.matmul %131, %2, %cst_23 {dimension_numbers = #tpu.dot_dimension_numbers<[1], [0], [0], [1], [0, 0, 1, 1], [], []>} : vector<8x32xf32>, vector<32x96xf32>, vector<8x96xf32> -> vector<8x96xf32>
    %135 = vector.extract_strided_slice %133 {offsets = [0, 0], sizes = [8, 32], strides = [1, 1]} : vector<8x96xf32> to vector<8x32xf32>
    %136 = vector.extract_strided_slice %134 {offsets = [0, 0], sizes = [8, 32], strides = [1, 1]} : vector<8x96xf32> to vector<8x32xf32>
    %137 = arith.addf %135, %136 : vector<8x32xf32>
    %138 = arith.negf %137 : vector<8x32xf32>
    %139 = math.exp %138 : vector<8x32xf32>
    %cst_24 = arith.constant 1.000000e+00 : f32
    %140 = vector.broadcast %cst_24 : f32 to vector<8x32xf32>
    %141 = arith.addf %140, %139 : vector<8x32xf32>
    %142 = arith.divf %140, %141 : vector<8x32xf32>
    %143 = vector.extract_strided_slice %133 {offsets = [0, 32], sizes = [8, 32], strides = [1, 1]} : vector<8x96xf32> to vector<8x32xf32>
    %144 = vector.extract_strided_slice %134 {offsets = [0, 32], sizes = [8, 32], strides = [1, 1]} : vector<8x96xf32> to vector<8x32xf32>
    %145 = arith.addf %143, %144 : vector<8x32xf32>
    %146 = arith.negf %145 : vector<8x32xf32>
    %147 = math.exp %146 : vector<8x32xf32>
    %cst_25 = arith.constant 1.000000e+00 : f32
    %148 = vector.broadcast %cst_25 : f32 to vector<8x32xf32>
    %149 = arith.addf %148, %147 : vector<8x32xf32>
    %150 = arith.divf %148, %149 : vector<8x32xf32>
    %151 = vector.extract_strided_slice %133 {offsets = [0, 64], sizes = [8, 32], strides = [1, 1]} : vector<8x96xf32> to vector<8x32xf32>
    %152 = vector.extract_strided_slice %134 {offsets = [0, 64], sizes = [8, 32], strides = [1, 1]} : vector<8x96xf32> to vector<8x32xf32>
    %153 = arith.addf %152, %11 : vector<8x32xf32>
    %154 = arith.mulf %142, %153 : vector<8x32xf32>
    %155 = arith.addf %151, %154 : vector<8x32xf32>
    %156 = math.tanh %155 : vector<8x32xf32>
    %cst_26 = arith.constant 1.000000e+00 : f32
    %157 = vector.broadcast %cst_26 : f32 to vector<8x32xf32>
    %158 = arith.subf %157, %150 : vector<8x32xf32>
    %159 = arith.mulf %158, %156 : vector<8x32xf32>
    %160 = arith.mulf %150, %131 : vector<8x32xf32>
    %161 = arith.addf %159, %160 : vector<8x32xf32>
    %162 = math.tanh %161 : vector<8x32xf32>
    %163 = vector.extract_strided_slice %8 {offsets = [40, 0], sizes = [8, 96], strides = [1, 1]} : vector<64x96xf32> to vector<8x96xf32>
    %cst_27 = arith.constant dense<0.000000e+00> : vector<8x96xf32>
    %164 = tpu.matmul %161, %2, %cst_27 {dimension_numbers = #tpu.dot_dimension_numbers<[1], [0], [0], [1], [0, 0, 1, 1], [], []>} : vector<8x32xf32>, vector<32x96xf32>, vector<8x96xf32> -> vector<8x96xf32>
    %165 = vector.extract_strided_slice %163 {offsets = [0, 0], sizes = [8, 32], strides = [1, 1]} : vector<8x96xf32> to vector<8x32xf32>
    %166 = vector.extract_strided_slice %164 {offsets = [0, 0], sizes = [8, 32], strides = [1, 1]} : vector<8x96xf32> to vector<8x32xf32>
    %167 = arith.addf %165, %166 : vector<8x32xf32>
    %168 = arith.negf %167 : vector<8x32xf32>
    %169 = math.exp %168 : vector<8x32xf32>
    %cst_28 = arith.constant 1.000000e+00 : f32
    %170 = vector.broadcast %cst_28 : f32 to vector<8x32xf32>
    %171 = arith.addf %170, %169 : vector<8x32xf32>
    %172 = arith.divf %170, %171 : vector<8x32xf32>
    %173 = vector.extract_strided_slice %163 {offsets = [0, 32], sizes = [8, 32], strides = [1, 1]} : vector<8x96xf32> to vector<8x32xf32>
    %174 = vector.extract_strided_slice %164 {offsets = [0, 32], sizes = [8, 32], strides = [1, 1]} : vector<8x96xf32> to vector<8x32xf32>
    %175 = arith.addf %173, %174 : vector<8x32xf32>
    %176 = arith.negf %175 : vector<8x32xf32>
    %177 = math.exp %176 : vector<8x32xf32>
    %cst_29 = arith.constant 1.000000e+00 : f32
    %178 = vector.broadcast %cst_29 : f32 to vector<8x32xf32>
    %179 = arith.addf %178, %177 : vector<8x32xf32>
    %180 = arith.divf %178, %179 : vector<8x32xf32>
    %181 = vector.extract_strided_slice %163 {offsets = [0, 64], sizes = [8, 32], strides = [1, 1]} : vector<8x96xf32> to vector<8x32xf32>
    %182 = vector.extract_strided_slice %164 {offsets = [0, 64], sizes = [8, 32], strides = [1, 1]} : vector<8x96xf32> to vector<8x32xf32>
    %183 = arith.addf %182, %11 : vector<8x32xf32>
    %184 = arith.mulf %172, %183 : vector<8x32xf32>
    %185 = arith.addf %181, %184 : vector<8x32xf32>
    %186 = math.tanh %185 : vector<8x32xf32>
    %cst_30 = arith.constant 1.000000e+00 : f32
    %187 = vector.broadcast %cst_30 : f32 to vector<8x32xf32>
    %188 = arith.subf %187, %180 : vector<8x32xf32>
    %189 = arith.mulf %188, %186 : vector<8x32xf32>
    %190 = arith.mulf %180, %161 : vector<8x32xf32>
    %191 = arith.addf %189, %190 : vector<8x32xf32>
    %192 = math.tanh %191 : vector<8x32xf32>
    %193 = vector.extract_strided_slice %8 {offsets = [48, 0], sizes = [8, 96], strides = [1, 1]} : vector<64x96xf32> to vector<8x96xf32>
    %cst_31 = arith.constant dense<0.000000e+00> : vector<8x96xf32>
    %194 = tpu.matmul %191, %2, %cst_31 {dimension_numbers = #tpu.dot_dimension_numbers<[1], [0], [0], [1], [0, 0, 1, 1], [], []>} : vector<8x32xf32>, vector<32x96xf32>, vector<8x96xf32> -> vector<8x96xf32>
    %195 = vector.extract_strided_slice %193 {offsets = [0, 0], sizes = [8, 32], strides = [1, 1]} : vector<8x96xf32> to vector<8x32xf32>
    %196 = vector.extract_strided_slice %194 {offsets = [0, 0], sizes = [8, 32], strides = [1, 1]} : vector<8x96xf32> to vector<8x32xf32>
    %197 = arith.addf %195, %196 : vector<8x32xf32>
    %198 = arith.negf %197 : vector<8x32xf32>
    %199 = math.exp %198 : vector<8x32xf32>
    %cst_32 = arith.constant 1.000000e+00 : f32
    %200 = vector.broadcast %cst_32 : f32 to vector<8x32xf32>
    %201 = arith.addf %200, %199 : vector<8x32xf32>
    %202 = arith.divf %200, %201 : vector<8x32xf32>
    %203 = vector.extract_strided_slice %193 {offsets = [0, 32], sizes = [8, 32], strides = [1, 1]} : vector<8x96xf32> to vector<8x32xf32>
    %204 = vector.extract_strided_slice %194 {offsets = [0, 32], sizes = [8, 32], strides = [1, 1]} : vector<8x96xf32> to vector<8x32xf32>
    %205 = arith.addf %203, %204 : vector<8x32xf32>
    %206 = arith.negf %205 : vector<8x32xf32>
    %207 = math.exp %206 : vector<8x32xf32>
    %cst_33 = arith.constant 1.000000e+00 : f32
    %208 = vector.broadcast %cst_33 : f32 to vector<8x32xf32>
    %209 = arith.addf %208, %207 : vector<8x32xf32>
    %210 = arith.divf %208, %209 : vector<8x32xf32>
    %211 = vector.extract_strided_slice %193 {offsets = [0, 64], sizes = [8, 32], strides = [1, 1]} : vector<8x96xf32> to vector<8x32xf32>
    %212 = vector.extract_strided_slice %194 {offsets = [0, 64], sizes = [8, 32], strides = [1, 1]} : vector<8x96xf32> to vector<8x32xf32>
    %213 = arith.addf %212, %11 : vector<8x32xf32>
    %214 = arith.mulf %202, %213 : vector<8x32xf32>
    %215 = arith.addf %211, %214 : vector<8x32xf32>
    %216 = math.tanh %215 : vector<8x32xf32>
    %cst_34 = arith.constant 1.000000e+00 : f32
    %217 = vector.broadcast %cst_34 : f32 to vector<8x32xf32>
    %218 = arith.subf %217, %210 : vector<8x32xf32>
    %219 = arith.mulf %218, %216 : vector<8x32xf32>
    %220 = arith.mulf %210, %191 : vector<8x32xf32>
    %221 = arith.addf %219, %220 : vector<8x32xf32>
    %222 = math.tanh %221 : vector<8x32xf32>
    %223 = vector.extract_strided_slice %8 {offsets = [56, 0], sizes = [8, 96], strides = [1, 1]} : vector<64x96xf32> to vector<8x96xf32>
    %cst_35 = arith.constant dense<0.000000e+00> : vector<8x96xf32>
    %224 = tpu.matmul %221, %2, %cst_35 {dimension_numbers = #tpu.dot_dimension_numbers<[1], [0], [0], [1], [0, 0, 1, 1], [], []>} : vector<8x32xf32>, vector<32x96xf32>, vector<8x96xf32> -> vector<8x96xf32>
    %225 = vector.extract_strided_slice %223 {offsets = [0, 0], sizes = [8, 32], strides = [1, 1]} : vector<8x96xf32> to vector<8x32xf32>
    %226 = vector.extract_strided_slice %224 {offsets = [0, 0], sizes = [8, 32], strides = [1, 1]} : vector<8x96xf32> to vector<8x32xf32>
    %227 = arith.addf %225, %226 : vector<8x32xf32>
    %228 = arith.negf %227 : vector<8x32xf32>
    %229 = math.exp %228 : vector<8x32xf32>
    %cst_36 = arith.constant 1.000000e+00 : f32
    %230 = vector.broadcast %cst_36 : f32 to vector<8x32xf32>
    %231 = arith.addf %230, %229 : vector<8x32xf32>
    %232 = arith.divf %230, %231 : vector<8x32xf32>
    %233 = vector.extract_strided_slice %223 {offsets = [0, 32], sizes = [8, 32], strides = [1, 1]} : vector<8x96xf32> to vector<8x32xf32>
    %234 = vector.extract_strided_slice %224 {offsets = [0, 32], sizes = [8, 32], strides = [1, 1]} : vector<8x96xf32> to vector<8x32xf32>
    %235 = arith.addf %233, %234 : vector<8x32xf32>
    %236 = arith.negf %235 : vector<8x32xf32>
    %237 = math.exp %236 : vector<8x32xf32>
    %cst_37 = arith.constant 1.000000e+00 : f32
    %238 = vector.broadcast %cst_37 : f32 to vector<8x32xf32>
    %239 = arith.addf %238, %237 : vector<8x32xf32>
    %240 = arith.divf %238, %239 : vector<8x32xf32>
    %241 = vector.extract_strided_slice %223 {offsets = [0, 64], sizes = [8, 32], strides = [1, 1]} : vector<8x96xf32> to vector<8x32xf32>
    %242 = vector.extract_strided_slice %224 {offsets = [0, 64], sizes = [8, 32], strides = [1, 1]} : vector<8x96xf32> to vector<8x32xf32>
    %243 = arith.addf %242, %11 : vector<8x32xf32>
    %244 = arith.mulf %232, %243 : vector<8x32xf32>
    %245 = arith.addf %241, %244 : vector<8x32xf32>
    %246 = math.tanh %245 : vector<8x32xf32>
    %cst_38 = arith.constant 1.000000e+00 : f32
    %247 = vector.broadcast %cst_38 : f32 to vector<8x32xf32>
    %248 = arith.subf %247, %240 : vector<8x32xf32>
    %249 = arith.mulf %248, %246 : vector<8x32xf32>
    %250 = arith.mulf %240, %221 : vector<8x32xf32>
    %251 = arith.addf %249, %250 : vector<8x32xf32>
    %252 = math.tanh %251 : vector<8x32xf32>
    %c0_39 = arith.constant 0 : index
    %c0_40 = arith.constant 0 : index
    %253 = vector.load %arg7[%c0_39, %c0_40] : memref<8x32xf32, #tpu.memory_space<vmem>>, vector<8x32xf32>
    tpu.vector_store %arg7[%c0_39, %c0_40], %251 {strides = array<i32>} : memref<8x32xf32, #tpu.memory_space<vmem>>, vector<8x32xf32>,
    %254 = tpu.concatenate %42, %72, %102, %132, %162, %192, %222, %252 in 0 : vector<8x32xf32>, vector<8x32xf32>, vector<8x32xf32>, vector<8x32xf32>, vector<8x32xf32>, vector<8x32xf32>, vector<8x32xf32>, vector<8x32xf32> -> vector<64x32xf32>
    %c0_41 = arith.constant 0 : index
    %c0_42 = arith.constant 0 : index
    %255 = vector.load %arg4[%c0_41, %c0_42] : memref<32x16xf32, #tpu.memory_space<vmem>>, vector<32x16xf32>
    %cst_43 = arith.constant dense<0.000000e+00> : vector<64x16xf32>
    %256 = tpu.matmul %254, %255, %cst_43 {dimension_numbers = #tpu.dot_dimension_numbers<[1], [0], [0], [1], [0, 0, 1, 1], [], []>} : vector<64x32xf32>, vector<32x16xf32>, vector<64x16xf32> -> vector<64x16xf32>
    %c0_44 = arith.constant 0 : index
    %c0_45 = arith.constant 0 : index
    %257 = vector.load %arg5[%c0_44, %c0_45] : memref<64x16xf32, #tpu.memory_space<vmem>>, vector<64x16xf32>
    %258 = arith.addf %256, %257 : vector<64x16xf32>
    %c0_46 = arith.constant 0 : index
    %c0_47 = arith.constant 0 : index
    %259 = vector.load %arg6[%c0_46, %c0_47] : memref<64x16xf32, #tpu.memory_space<vmem>>, vector<64x16xf32>
    tpu.vector_store %arg6[%c0_46, %c0_47], %258 {strides = array<i32>} : memref<64x16xf32, #tpu.memory_space<vmem>>, vector<64x16xf32>,
    return
  }
}

</mosaic_0001>

<llo_original>
// kernel: tpu_custom_call.1
$region0: #{tpu_custom_call.1}
  #allocation0 [shape = 'u32[]', space=smem, size = 0x4, offset = 0x4, fixed_abs, tag = 'smem constant byte address 0x4 - core index']
  #allocation1 [shape = 'u32[144,128]{1,0:T(1,128)}', space=vmem, size = 0x12000, scoped, tag = 'internal scratch']
  %s0 = inlined_call_operand.vmem [shape: f32[64,16], index: 0, kind: input, shape index: {}]
  %s1 = inlined_call_operand.vmem [shape: f32[8,32], index: 1, kind: input, shape index: {}]
  %s2 = inlined_call_operand.vmem [shape: f32[48,96], index: 2, kind: input, shape index: {}]
  %s3 = inlined_call_operand.vmem [shape: f32[1,128], index: 3, kind: input, shape index: {}]
  %s4 = inlined_call_operand.vmem [shape: f32[32,16], index: 4, kind: input, shape index: {}]
  %s5 = inlined_call_operand.vmem [shape: f32[64,16], index: 5, kind: input, shape index: {}]
  %s6 = inlined_call_operand.vmem [shape: f32[64,16], index: 6, kind: output, shape index: {0}]
  %s7 = inlined_call_operand.hbm [shape: f32[8,32], index: 7, kind: output, shape index: {1}]
  %8 = xla_tuple %s6, %s7
  %s9 = sld [smem:[#allocation0]]
  $region42: #{tpu_custom_call.1} parent=0
    _
  %s11 = ssub.s32 1, %s9
  %s12 = scalar_select 0, %s11, %s9
  $region1: #{tpu_custom_call.1} parent=0
    #allocation2 [shape = 'u8[4096]{0}', space=vmem, size = 0x1000, scoped, tag = 'output window, operand 1, single buffered']
    #allocation3 [shape = 's32[1]{0}', space=sflag, size = 0x4, scoped, tag = 'scoped memory for tpu_custom_call.1']
    %13 = vsyncpa [#allocation3], 0
    // Predicated region
    $region2: #{tpu_custom_call.1} parent=1 // pred_check
      _
    $region3: #{tpu_custom_call.1} parent=1 // pred_check_branch
      %15 = sbr.rel (0) target = $region5
    $region4: #{tpu_custom_call.1} parent=1 // pred_region
      _
    $region5: #{tpu_custom_call.1} parent=1 // pred_fallthru
      _
    // Predicated region
    $region6: #{tpu_custom_call.1} parent=1 // pred_check
      _
    $region7: #{tpu_custom_call.1} parent=1 // pred_check_branch
      %17 = sbr.rel (0) target = $region9
    $region8: #{tpu_custom_call.1} parent=1 // pred_region
      _
    $region9: #{tpu_custom_call.1} parent=1 // pred_fallthru
      _
    // Predicated region
    $region10: #{tpu_custom_call.1} parent=1 // pred_check
      _
    $region11: #{tpu_custom_call.1} parent=1 // pred_check_branch
      %19 = sbr.rel (0) target = $region13
    $region12: #{tpu_custom_call.1} parent=1 // pred_region
      _
    $region13: #{tpu_custom_call.1} parent=1 // pred_fallthru
      _
    // Predicated region
    $region14: #{tpu_custom_call.1} parent=1 // pred_check
      _
    $region15: #{tpu_custom_call.1} parent=1 // pred_check_branch
      %21 = sbr.rel (0) target = $region17
    $region16: #{tpu_custom_call.1} parent=1 // pred_region
      _
    $region17: #{tpu_custom_call.1} parent=1 // pred_fallthru
      _
    // Predicated region
    $region18: #{tpu_custom_call.1} parent=1 // pred_check
      _
    $region19: #{tpu_custom_call.1} parent=1 // pred_check_branch
      %23 = sbr.rel (0) target = $region21
    $region20: #{tpu_custom_call.1} parent=1 // pred_region
      _
    $region21: #{tpu_custom_call.1} parent=1 // pred_fallthru
      _
    // Predicated region
    $region22: #{tpu_custom_call.1} parent=1 // pred_check
      _
    $region23: #{tpu_custom_call.1} parent=1 // pred_check_branch
      %25 = sbr.rel (0) target = $region25
    $region24: #{tpu_custom_call.1} parent=1 // pred_region
      _
    $region25: #{tpu_custom_call.1} parent=1 // pred_fallthru
      _
    %v26 = vld [vmem:[%s2] sm:$0xff]
    %v27 = vld [vmem:[%s2 + $0x8] sm:$0xff]
    %v28 = vld [vmem:[%s2 + $0x10] sm:$0xff]
    %v29 = vld [vmem:[%s2 + $0x18] sm:$0xff]
    %v30 = vld [vmem:[%s2 + $0x20] sm:$0xff]
    %v31 = vld [vmem:[%s2 + $0x28] sm:$0xff]
    %v32 = vld [vmem:[%s3] sm:$0x1]
    %v33 = vld [vmem:[%s0] sm:$0xff]
    %v34 = vld [vmem:[%s0 + $0x8] sm:$0xff]
    %v35 = vld [vmem:[%s0 + $0x10] sm:$0xff]
    %v36 = vld [vmem:[%s0 + $0x18] sm:$0xff]
    %v37 = vld [vmem:[%s0 + $0x20] sm:$0xff]
    %v38 = vld [vmem:[%s0 + $0x28] sm:$0xff]
    %v39 = vld [vmem:[%s0 + $0x30] sm:$0xff]
    %v40 = vld [vmem:[%s0 + $0x38] sm:$0xff]
    %v42 = vlaneseq
    %v43 = vshrl.u32 %v42, 7
    %v44 = vsub.s32 0, %v43
    %v45 = vrot.slane %v32, %v44
    %vm47 = vcmask 130048
    %v49 = vsel %vm47, %v33, 0
    %v52 = vsel %vm47, %v34, 0
    %v55 = vsel %vm47, %v35, 0
    %v58 = vsel %vm47, %v36, 0
    %v61 = vsel %vm47, %v37, 0
    %v64 = vsel %vm47, %v38, 0
    %v67 = vsel %vm47, %v39, 0
    %v70 = vsel %vm47, %v40, 0
    %72 = vmatprep.subr.mxu0 0.0
    %73 = vmatpush1.msra.mxu0 %v26
    %74 = vmatprep.subr.mxu0 0.0
    %75 = vmatpush1.msra.mxu0 %v27
    %76 = vmatprep.subr.mxu0 0.0
    %77 = vmatpush1.msra.mxu0 0.0
    %78 = vmatprep.subr.mxu0 0.0
    %79 = vmatpush1.msra.mxu0 0.0
    %80 = vmatprep.subr.mxu0 0.0
    %81 = vmatpush1.msra.mxu0 0.0
    %82 = vmatprep.subr.mxu0 0.0
    %83 = vmatpush1.msra.mxu0 0.0
    %84 = vmatprep.subr.mxu0 0.0
    %85 = vmatpush1.msra.mxu0 0.0
    %86 = vmatprep.subr.mxu0 0.0
    %87 = vmatpush1.msra.mxu0 0.0
    %88 = vmatprep.subr.mxu0 0.0
    %89 = vmatpush1.msra.mxu0 0.0
    %90 = vmatprep.subr.mxu0 0.0
    %91 = vmatpush1.msra.mxu0 0.0
    %92 = vmatprep.subr.mxu0 0.0
    %93 = vmatpush1.msra.mxu0 0.0
    %94 = vmatprep.subr.mxu0 0.0
    %95 = vmatpush1.msra.mxu0 0.0
    %96 = vmatprep.subr.mxu0 0.0
    %97 = vmatpush1.msra.mxu0 0.0
    %98 = vmatprep.subr.mxu0 0.0
    %99 = vmatpush1.msra.mxu0 0.0
    %100 = vmatprep.subr.mxu0 0.0
    %101 = vmatpush1.msra.mxu0 0.0
    %102 = vmatprep.subr.mxu0 0.0
    %103 = vmatpush1.msra.mxu0 0.0
    %104 = vmatprep.subr.mxu0 0.0
    %105 = vmatpush1.msra.mxu0 0.0
    %106 = vmatprep.subr.mxu0 0.0
    %107 = vmatpush1.msra.mxu0 0.0
    %108 = vmatprep.subr.mxu0 0.0
    %109 = vmatpush1.msra.mxu0 0.0
    %110 = vmatprep.subr.mxu0 0.0
    %111 = vmatpush1.msra.mxu0 0.0
    %112 = vmatprep.subr.mxu0 0.0
    %113 = vmatpush1.msra.mxu0 0.0
    %114 = vmatprep.subr.mxu0 0.0
    %115 = vmatpush1.msra.mxu0 0.0
    %116 = vmatprep.subr.mxu0 0.0
    %117 = vmatpush1.msra.mxu0 0.0
    %118 = vmatprep.subr.mxu0 0.0
    %119 = vmatpush1.msra.mxu0 0.0
    %120 = vmatprep.subr.mxu0 0.0
    %121 = vmatpush1.msra.mxu0 0.0
    %122 = vmatprep.subr.mxu0 0.0
    %123 = vmatpush1.msra.mxu0 0.0
    %124 = vmatprep.subr.mxu0 0.0
    %125 = vmatpush1.msra.mxu0 0.0
    %126 = vmatprep.subr.mxu0 0.0
    %127 = vmatpush1.msra.mxu0 0.0
    %128 = vmatprep.subr.mxu0 0.0
    %129 = vmatpush1.msra.mxu0 0.0
    %130 = vmatprep.subr.mxu0 0.0
    %131 = vmatpush1.msra.mxu0 0.0
    %132 = vmatprep.subr.mxu0 0.0
    %133 = vmatpush1.msra.mxu0 0.0
    %134 = vmatprep.subr.mxu0 0.0
    %135 = vmatpush1.msra.mxu0 0.0
    %136 = vmatprep.mubr.f32.mxu0 0.0
    %137 = vmatmul.mubr.f32.gmra.mrb[0].mxu0 %v49
    %v138 = vpop.f32.mrb[0].mxu0
    %v139 = vadd.f32 %v45, %v138
    %v140 = vpop.f32.mrb[0].mxu0
    %141 = vmatprep.mubr.f32.mxu0 0.0
    %142 = vmatmul.mubr.f32.gmra.mrb[0].mxu0 %v52
    %v143 = vpop.f32.mrb[0].mxu0
    %v144 = vadd.f32 %v45, %v143
    %v145 = vpop.f32.mrb[0].mxu0
    %146 = vmatprep.mubr.f32.mxu0 0.0
    %147 = vmatmul.mubr.f32.gmra.mrb[0].mxu0 %v55
    %v148 = vpop.f32.mrb[0].mxu0
    %v149 = vadd.f32 %v45, %v148
    %v150 = vpop.f32.mrb[0].mxu0
    %151 = vmatprep.mubr.f32.mxu0 0.0
    %152 = vmatmul.mubr.f32.gmra.mrb[0].mxu0 %v58
    %v153 = vpop.f32.mrb[0].mxu0
    %v154 = vadd.f32 %v45, %v153
    %v155 = vpop.f32.mrb[0].mxu0
    %156 = vmatprep.mubr.f32.mxu0 0.0
    %157 = vmatmul.mubr.f32.gmra.mrb[0].mxu0 %v61
    %v158 = vpop.f32.mrb[0].mxu0
    %v159 = vadd.f32 %v45, %v158
    %v160 = vpop.f32.mrb[0].mxu0
    %161 = vmatprep.mubr.f32.mxu0 0.0
    %162 = vmatmul.mubr.f32.gmra.mrb[0].mxu0 %v64
    %v163 = vpop.f32.mrb[0].mxu0
    %v164 = vadd.f32 %v45, %v163
    %v165 = vpop.f32.mrb[0].mxu0
    %166 = vmatprep.mubr.f32.mxu0 0.0
    %167 = vmatmul.mubr.f32.gmra.mrb[0].mxu0 %v67
    %v168 = vpop.f32.mrb[0].mxu0
    %v169 = vadd.f32 %v45, %v168
    %v170 = vpop.f32.mrb[0].mxu0
    %171 = vmatprep.mubr.f32.mxu0 0.0
    %172 = vmatmul.mubr.f32.gmra.mrb[0].mxu0 %v70
    %v173 = vpop.f32.mrb[0].mxu0
    %v174 = vadd.f32 %v45, %v173
    %v175 = vpop.f32.mrb[0].mxu0
    %176 = vdwg.mxu0
    %v177 = vld [vmem:[%s1] sm:$0xff]
    %vm178 = vcmask 261120
    %v180 = vsel %vm178, %v177, 0
    %182 = vmatprep.subr.mxu0 0.0
    %183 = vmatpush1.msra.mxu0 %v28
    %184 = vmatprep.subr.mxu0 0.0
    %185 = vmatpush1.msra.mxu0 %v29
    %186 = vmatprep.subr.mxu0 0.0
    %187 = vmatpush1.msra.mxu0 %v30
    %188 = vmatprep.subr.mxu0 0.0
    %189 = vmatpush1.msra.mxu0 %v31
    %190 = vmatprep.subr.mxu0 0.0
    %191 = vmatpush1.msra.mxu0 0.0
    %192 = vmatprep.subr.mxu0 0.0
    %193 = vmatpush1.msra.mxu0 0.0
    %194 = vmatprep.subr.mxu0 0.0
    %195 = vmatpush1.msra.mxu0 0.0
    %196 = vmatprep.subr.mxu0 0.0
    %197 = vmatpush1.msra.mxu0 0.0
    %198 = vmatprep.subr.mxu0 0.0
    %199 = vmatpush1.msra.mxu0 0.0
    %200 = vmatprep.subr.mxu0 0.0
    %201 = vmatpush1.msra.mxu0 0.0
    %202 = vmatprep.subr.mxu0 0.0
    %203 = vmatpush1.msra.mxu0 0.0
    %204 = vmatprep.subr.mxu0 0.0
    %205 = vmatpush1.msra.mxu0 0.0
    %206 = vmatprep.subr.mxu0 0.0
    %207 = vmatpush1.msra.mxu0 0.0
    %208 = vmatprep.subr.mxu0 0.0
    %209 = vmatpush1.msra.mxu0 0.0
    %210 = vmatprep.subr.mxu0 0.0
    %211 = vmatpush1.msra.mxu0 0.0
    %212 = vmatprep.subr.mxu0 0.0
    %213 = vmatpush1.msra.mxu0 0.0
    %214 = vmatprep.subr.mxu0 0.0
    %215 = vmatpush1.msra.mxu0 0.0
    %216 = vmatprep.subr.mxu0 0.0
    %217 = vmatpush1.msra.mxu0 0.0
    %218 = vmatprep.subr.mxu0 0.0
    %219 = vmatpush1.msra.mxu0 0.0
    %220 = vmatprep.subr.mxu0 0.0
    %221 = vmatpush1.msra.mxu0 0.0
    %222 = vmatprep.subr.mxu0 0.0
    %223 = vmatpush1.msra.mxu0 0.0
    %224 = vmatprep.subr.mxu0 0.0
    %225 = vmatpush1.msra.mxu0 0.0
    %226 = vmatprep.subr.mxu0 0.0
    %227 = vmatpush1.msra.mxu0 0.0
    %228 = vmatprep.subr.mxu0 0.0
    %229 = vmatpush1.msra.mxu0 0.0
    %230 = vmatprep.subr.mxu0 0.0
    %231 = vmatpush1.msra.mxu0 0.0
    %232 = vmatprep.subr.mxu0 0.0
    %233 = vmatpush1.msra.mxu0 0.0
    %234 = vmatprep.subr.mxu0 0.0
    %235 = vmatpush1.msra.mxu0 0.0
    %236 = vmatprep.subr.mxu0 0.0
    %237 = vmatpush1.msra.mxu0 0.0
    %238 = vmatprep.subr.mxu0 0.0
    %239 = vmatpush1.msra.mxu0 0.0
    %240 = vmatprep.subr.mxu0 0.0
    %241 = vmatpush1.msra.mxu0 0.0
    %242 = vmatprep.subr.mxu0 0.0
    %243 = vmatpush1.msra.mxu0 0.0
    %244 = vmatprep.subr.mxu0 0.0
    %245 = vmatpush1.msra.mxu0 0.0
    %246 = vmatprep.mubr.f32.mxu0 0.0
    %247 = vmatmul.mubr.f32.gmra.mrb[0].mxu0 %v180
    %v248 = vpop.f32.mrb[0].mxu0
    %v249 = vadd.f32 0.0, %v248
    %v250 = vpop.f32.mrb[0].mxu0
    %251 = vdwg.mxu0
    %v252 = vadd.f32 %v139, %v249
    %v253 = vxor.u32 %v252, 2147483648
    %v254 = vmul.f32 %v253, 1.442695
    %v255 = vpow.pop %v254
    %v256 = vadd.f32 %v255, 1.0
    %v257 = vrcp.pop %v256
    %v258 = vmul.f32 1.0, %v257
    %259 = vrot.lane.b32.xlu0 %v45, 96
    %v260 = vpop.permute.xlu0 %259
    %v262 = vadd.f32 %v249, %v260
    %264 = vrot.lane.b32.xlu0 %v262, 64
    %v265 = vpop.permute.xlu0 %264
    %v267 = vmul.f32 %v258, %v265
    %269 = vrot.lane.b32.xlu0 %v267, 64
    %v270 = vpop.permute.xlu0 %269
    %v272 = vadd.f32 %v139, %v270
    %v273 = vtanh.pop %v272
    %v274 = vsub.f32 1.0, %v258
    %276 = vrot.lane.b32.xlu0 %v273, 96
    %v277 = vpop.permute.xlu0 %276
    %v279 = vmul.f32 %v274, %v277
    %280 = vrot.lane.b32.xlu0 %v177, 32
    %v281 = vpop.permute.xlu0 %280
    %v283 = vmul.f32 %v258, %v281
    %v284 = vadd.f32 %v279, %v283
    %v285 = vtanh.pop %v284
    %287 = vrot.lane.b32.xlu0 %v284, 96
    %v288 = vpop.permute.xlu0 %287
    %v289 = vsel %vm178, %v288, 0
    %291 = vmatprep.subr.mxu0 0.0
    %292 = vmatpush1.msra.mxu0 %v28
    %293 = vmatprep.subr.mxu0 0.0
    %294 = vmatpush1.msra.mxu0 %v29
    %295 = vmatprep.subr.mxu0 0.0
    %296 = vmatpush1.msra.mxu0 %v30
    %297 = vmatprep.subr.mxu0 0.0
    %298 = vmatpush1.msra.mxu0 %v31
    %299 = vmatprep.subr.mxu0 0.0
    %300 = vmatpush1.msra.mxu0 0.0
    %301 = vmatprep.subr.mxu0 0.0
    %302 = vmatpush1.msra.mxu0 0.0
    %303 = vmatprep.subr.mxu0 0.0
    %304 = vmatpush1.msra.mxu0 0.0
    %305 = vmatprep.subr.mxu0 0.0
    %306 = vmatpush1.msra.mxu0 0.0
    %307 = vmatprep.subr.mxu0 0.0
    %308 = vmatpush1.msra.mxu0 0.0
    %309 = vmatprep.subr.mxu0 0.0
    %310 = vmatpush1.msra.mxu0 0.0
    %311 = vmatprep.subr.mxu0 0.0
    %312 = vmatpush1.msra.mxu0 0.0
    %313 = vmatprep.subr.mxu0 0.0
    %314 = vmatpush1.msra.mxu0 0.0
    %315 = vmatprep.subr.mxu0 0.0
    %316 = vmatpush1.msra.mxu0 0.0
    %317 = vmatprep.subr.mxu0 0.0
    %318 = vmatpush1.msra.mxu0 0.0
    %319 = vmatprep.subr.mxu0 0.0
    %320 = vmatpush1.msra.mxu0 0.0
    %321 = vmatprep.subr.mxu0 0.0
    %322 = vmatpush1.msra.mxu0 0.0
    %323 = vmatprep.subr.mxu0 0.0
    %324 = vmatpush1.msra.mxu0 0.0
    %325 = vmatprep.subr.mxu0 0.0
    %326 = vmatpush1.msra.mxu0 0.0
    %327 = vmatprep.subr.mxu0 0.0
    %328 = vmatpush1.msra.mxu0 0.0
    %329 = vmatprep.subr.mxu0 0.0
    %330 = vmatpush1.msra.mxu0 0.0
    %331 = vmatprep.subr.mxu0 0.0
    %332 = vmatpush1.msra.mxu0 0.0
    %333 = vmatprep.subr.mxu0 0.0
    %334 = vmatpush1.msra.mxu0 0.0
    %335 = vmatprep.subr.mxu0 0.0
    %336 = vmatpush1.msra.mxu0 0.0
    %337 = vmatprep.subr.mxu0 0.0
    %338 = vmatpush1.msra.mxu0 0.0
    %339 = vmatprep.subr.mxu0 0.0
    %340 = vmatpush1.msra.mxu0 0.0
    %341 = vmatprep.subr.mxu0 0.0
    %342 = vmatpush1.msra.mxu0 0.0
    %343 = vmatprep.subr.mxu0 0.0
    %344 = vmatpush1.msra.mxu0 0.0
    %345 = vmatprep.subr.mxu0 0.0
    %346 = vmatpush1.msra.mxu0 0.0
    %347 = vmatprep.subr.mxu0 0.0
    %348 = vmatpush1.msra.mxu0 0.0
    %349 = vmatprep.subr.mxu0 0.0
    %350 = vmatpush1.msra.mxu0 0.0
    %351 = vmatprep.subr.mxu0 0.0
    %352 = vmatpush1.msra.mxu0 0.0
    %353 = vmatprep.subr.mxu0 0.0
    %354 = vmatpush1.msra.mxu0 0.0
    %355 = vmatprep.mubr.f32.mxu0 0.0
    %356 = vmatmul.mubr.f32.gmra.mrb[0].mxu0 %v289
    %v357 = vpop.f32.mrb[0].mxu0
    %v358 = vadd.f32 0.0, %v357
    %v359 = vpop.f32.mrb[0].mxu0
    %360 = vdwg.mxu0
    %v361 = vadd.f32 %v144, %v358
    %v362 = vxor.u32 %v361, 2147483648
    %v363 = vmul.f32 %v362, 1.442695
    %v364 = vpow.pop %v363
    %v365 = vadd.f32 %v364, 1.0
    %v366 = vrcp.pop %v365
    %v367 = vmul.f32 1.0, %v366
    %v368 = vadd.f32 %v358, %v260
    %370 = vrot.lane.b32.xlu0 %v368, 64
    %v371 = vpop.permute.xlu0 %370
    %v373 = vmul.f32 %v367, %v371
    %375 = vrot.lane.b32.xlu0 %v373, 64
    %v376 = vpop.permute.xlu0 %375
    %v378 = vadd.f32 %v144, %v376
    %v379 = vtanh.pop %v378
    %v380 = vsub.f32 1.0, %v367
    %382 = vrot.lane.b32.xlu0 %v379, 96
    %v383 = vpop.permute.xlu0 %382
    %v385 = vmul.f32 %v380, %v383
    %v386 = vmul.f32 %v367, %v284
    %v387 = vadd.f32 %v385, %v386
    %v388 = vtanh.pop %v387
    %390 = vrot.lane.b32.xlu0 %v387, 96
    %v391 = vpop.permute.xlu0 %390
    %v392 = vsel %vm178, %v391, 0
    %394 = vmatprep.subr.mxu0 0.0
    %395 = vmatpush1.msra.mxu0 %v28
    %396 = vmatprep.subr.mxu0 0.0
    %397 = vmatpush1.msra.mxu0 %v29
    %398 = vmatprep.subr.mxu0 0.0
    %399 = vmatpush1.msra.mxu0 %v30
    %400 = vmatprep.subr.mxu0 0.0
    %401 = vmatpush1.msra.mxu0 %v31
    %402 = vmatprep.subr.mxu0 0.0
    %403 = vmatpush1.msra.mxu0 0.0
    %404 = vmatprep.subr.mxu0 0.0
    %405 = vmatpush1.msra.mxu0 0.0
    %406 = vmatprep.subr.mxu0 0.0
    %407 = vmatpush1.msra.mxu0 0.0
    %408 = vmatprep.subr.mxu0 0.0
    %409 = vmatpush1.msra.mxu0 0.0
    %410 = vmatprep.subr.mxu0 0.0
    %411 = vmatpush1.msra.mxu0 0.0
    %412 = vmatprep.subr.mxu0 0.0
    %413 = vmatpush1.msra.mxu0 0.0
    %414 = vmatprep.subr.mxu0 0.0
    %415 = vmatpush1.msra.mxu0 0.0
    %416 = vmatprep.subr.mxu0 0.0
    %417 = vmatpush1.msra.mxu0 0.0
    %418 = vmatprep.subr.mxu0 0.0
    %419 = vmatpush1.msra.mxu0 0.0
    %420 = vmatprep.subr.mxu0 0.0
    %421 = vmatpush1.msra.mxu0 0.0
    %422 = vmatprep.subr.mxu0 0.0
    %423 = vmatpush1.msra.mxu0 0.0
    %424 = vmatprep.subr.mxu0 0.0
    %425 = vmatpush1.msra.mxu0 0.0
    %426 = vmatprep.subr.mxu0 0.0
    %427 = vmatpush1.msra.mxu0 0.0
    %428 = vmatprep.subr.mxu0 0.0
    %429 = vmatpush1.msra.mxu0 0.0
    %430 = vmatprep.subr.mxu0 0.0
    %431 = vmatpush1.msra.mxu0 0.0
    %432 = vmatprep.subr.mxu0 0.0
    %433 = vmatpush1.msra.mxu0 0.0
    %434 = vmatprep.subr.mxu0 0.0
    %435 = vmatpush1.msra.mxu0 0.0
    %436 = vmatprep.subr.mxu0 0.0
    %437 = vmatpush1.msra.mxu0 0.0
    %438 = vmatprep.subr.mxu0 0.0
    %439 = vmatpush1.msra.mxu0 0.0
    %440 = vmatprep.subr.mxu0 0.0
    %441 = vmatpush1.msra.mxu0 0.0
    %442 = vmatprep.subr.mxu0 0.0
    %443 = vmatpush1.msra.mxu0 0.0
    %444 = vmatprep.subr.mxu0 0.0
    %445 = vmatpush1.msra.mxu0 0.0
    %446 = vmatprep.subr.mxu0 0.0
    %447 = vmatpush1.msra.mxu0 0.0
    %448 = vmatprep.subr.mxu0 0.0
    %449 = vmatpush1.msra.mxu0 0.0
    %450 = vmatprep.subr.mxu0 0.0
    %451 = vmatpush1.msra.mxu0 0.0
    %452 = vmatprep.subr.mxu0 0.0
    %453 = vmatpush1.msra.mxu0 0.0
    %454 = vmatprep.subr.mxu0 0.0
    %455 = vmatpush1.msra.mxu0 0.0
    %456 = vmatprep.subr.mxu0 0.0
    %457 = vmatpush1.msra.mxu0 0.0
    %458 = vmatprep.mubr.f32.mxu0 0.0
    %459 = vmatmul.mubr.f32.gmra.mrb[0].mxu0 %v392
    %v460 = vpop.f32.mrb[0].mxu0
    %v461 = vadd.f32 0.0, %v460
    %v462 = vpop.f32.mrb[0].mxu0
    %463 = vdwg.mxu0
    %v464 = vadd.f32 %v149, %v461
    %v465 = vxor.u32 %v464, 2147483648
    %v466 = vmul.f32 %v465, 1.442695
    %v467 = vpow.pop %v466
    %v468 = vadd.f32 %v467, 1.0
    %v469 = vrcp.pop %v468
    %v470 = vmul.f32 1.0, %v469
    %v471 = vadd.f32 %v461, %v260
    %473 = vrot.lane.b32.xlu0 %v471, 64
    %v474 = vpop.permute.xlu0 %473
    %v476 = vmul.f32 %v470, %v474
    %478 = vrot.lane.b32.xlu0 %v476, 64
    %v479 = vpop.permute.xlu0 %478
    %v481 = vadd.f32 %v149, %v479
    %v482 = vtanh.pop %v481
    %v483 = vsub.f32 1.0, %v470
    %485 = vrot.lane.b32.xlu0 %v482, 96
    %v486 = vpop.permute.xlu0 %485
    %v488 = vmul.f32 %v483, %v486
    %v489 = vmul.f32 %v470, %v387
    %v490 = vadd.f32 %v488, %v489
    %v491 = vtanh.pop %v490
    %493 = vrot.lane.b32.xlu0 %v490, 96
    %v494 = vpop.permute.xlu0 %493
    %v495 = vsel %vm178, %v494, 0
    %497 = vmatprep.subr.mxu0 0.0
    %498 = vmatpush1.msra.mxu0 %v28
    %499 = vmatprep.subr.mxu0 0.0
    %500 = vmatpush1.msra.mxu0 %v29
    %501 = vmatprep.subr.mxu0 0.0
    %502 = vmatpush1.msra.mxu0 %v30
    %503 = vmatprep.subr.mxu0 0.0
    %504 = vmatpush1.msra.mxu0 %v31
    %505 = vmatprep.subr.mxu0 0.0
    %506 = vmatpush1.msra.mxu0 0.0
    %507 = vmatprep.subr.mxu0 0.0
    %508 = vmatpush1.msra.mxu0 0.0
    %509 = vmatprep.subr.mxu0 0.0
    %510 = vmatpush1.msra.mxu0 0.0
    %511 = vmatprep.subr.mxu0 0.0
    %512 = vmatpush1.msra.mxu0 0.0
    %513 = vmatprep.subr.mxu0 0.0
    %514 = vmatpush1.msra.mxu0 0.0
    %515 = vmatprep.subr.mxu0 0.0
    %516 = vmatpush1.msra.mxu0 0.0
    %517 = vmatprep.subr.mxu0 0.0
    %518 = vmatpush1.msra.mxu0 0.0
    %519 = vmatprep.subr.mxu0 0.0
    %520 = vmatpush1.msra.mxu0 0.0
    %521 = vmatprep.subr.mxu0 0.0
    %522 = vmatpush1.msra.mxu0 0.0
    %523 = vmatprep.subr.mxu0 0.0
    %524 = vmatpush1.msra.mxu0 0.0
    %525 = vmatprep.subr.mxu0 0.0
    %526 = vmatpush1.msra.mxu0 0.0
    %527 = vmatprep.subr.mxu0 0.0
    %528 = vmatpush1.msra.mxu0 0.0
    %529 = vmatprep.subr.mxu0 0.0
    %530 = vmatpush1.msra.mxu0 0.0
    %531 = vmatprep.subr.mxu0 0.0
    %532 = vmatpush1.msra.mxu0 0.0
    %533 = vmatprep.subr.mxu0 0.0
    %534 = vmatpush1.msra.mxu0 0.0
    %535 = vmatprep.subr.mxu0 0.0
    %536 = vmatpush1.msra.mxu0 0.0
    %537 = vmatprep.subr.mxu0 0.0
    %538 = vmatpush1.msra.mxu0 0.0
    %539 = vmatprep.subr.mxu0 0.0
    %540 = vmatpush1.msra.mxu0 0.0
    %541 = vmatprep.subr.mxu0 0.0
    %542 = vmatpush1.msra.mxu0 0.0
    %543 = vmatprep.subr.mxu0 0.0
    %544 = vmatpush1.msra.mxu0 0.0
    %545 = vmatprep.subr.mxu0 0.0
    %546 = vmatpush1.msra.mxu0 0.0
    %547 = vmatprep.subr.mxu0 0.0
    %548 = vmatpush1.msra.mxu0 0.0
    %549 = vmatprep.subr.mxu0 0.0
    %550 = vmatpush1.msra.mxu0 0.0
    %551 = vmatprep.subr.mxu0 0.0
    %552 = vmatpush1.msra.mxu0 0.0
    %553 = vmatprep.subr.mxu0 0.0
    %554 = vmatpush1.msra.mxu0 0.0
    %555 = vmatprep.subr.mxu0 0.0
    %556 = vmatpush1.msra.mxu0 0.0
    %557 = vmatprep.subr.mxu0 0.0
    %558 = vmatpush1.msra.mxu0 0.0
    %559 = vmatprep.subr.mxu0 0.0
    %560 = vmatpush1.msra.mxu0 0.0
    %561 = vmatprep.mubr.f32.mxu0 0.0
    %562 = vmatmul.mubr.f32.gmra.mrb[0].mxu0 %v495
    %v563 = vpop.f32.mrb[0].mxu0
    %v564 = vadd.f32 0.0, %v563
    %v565 = vpop.f32.mrb[0].mxu0
    %566 = vdwg.mxu0
    %v567 = vadd.f32 %v154, %v564
    %v568 = vxor.u32 %v567, 2147483648
    %v569 = vmul.f32 %v568, 1.442695
    %v570 = vpow.pop %v569
    %v571 = vadd.f32 %v570, 1.0
    %v572 = vrcp.pop %v571
    %v573 = vmul.f32 1.0, %v572
    %v574 = vadd.f32 %v564, %v260
    %576 = vrot.lane.b32.xlu0 %v574, 64
    %v577 = vpop.permute.xlu0 %576
    %v579 = vmul.f32 %v573, %v577
    %581 = vrot.lane.b32.xlu0 %v579, 64
    %v582 = vpop.permute.xlu0 %581
    %v584 = vadd.f32 %v154, %v582
    %v585 = vtanh.pop %v584
    %v586 = vsub.f32 1.0, %v573
    %588 = vrot.lane.b32.xlu0 %v585, 96
    %v589 = vpop.permute.xlu0 %588
    %v591 = vmul.f32 %v586, %v589
    %v592 = vmul.f32 %v573, %v490
    %v593 = vadd.f32 %v591, %v592
    %v594 = vtanh.pop %v593
    %596 = vrot.lane.b32.xlu0 %v593, 96
    %v597 = vpop.permute.xlu0 %596
    %v598 = vsel %vm178, %v597, 0
    %600 = vmatprep.subr.mxu0 0.0
    %601 = vmatpush1.msra.mxu0 %v28
    %602 = vmatprep.subr.mxu0 0.0
    %603 = vmatpush1.msra.mxu0 %v29
    %604 = vmatprep.subr.mxu0 0.0
    %605 = vmatpush1.msra.mxu0 %v30
    %606 = vmatprep.subr.mxu0 0.0
    %607 = vmatpush1.msra.mxu0 %v31
    %608 = vmatprep.subr.mxu0 0.0
    %609 = vmatpush1.msra.mxu0 0.0
    %610 = vmatprep.subr.mxu0 0.0
    %611 = vmatpush1.msra.mxu0 0.0
    %612 = vmatprep.subr.mxu0 0.0
    %613 = vmatpush1.msra.mxu0 0.0
    %614 = vmatprep.subr.mxu0 0.0
    %615 = vmatpush1.msra.mxu0 0.0
    %616 = vmatprep.subr.mxu0 0.0
    %617 = vmatpush1.msra.mxu0 0.0
    %618 = vmatprep.subr.mxu0 0.0
    %619 = vmatpush1.msra.mxu0 0.0
    %620 = vmatprep.subr.mxu0 0.0
    %621 = vmatpush1.msra.mxu0 0.0
    %622 = vmatprep.subr.mxu0 0.0
    %623 = vmatpush1.msra.mxu0 0.0
    %624 = vmatprep.subr.mxu0 0.0
    %625 = vmatpush1.msra.mxu0 0.0
    %626 = vmatprep.subr.mxu0 0.0
    %627 = vmatpush1.msra.mxu0 0.0
    %628 = vmatprep.subr.mxu0 0.0
    %629 = vmatpush1.msra.mxu0 0.0
    %630 = vmatprep.subr.mxu0 0.0
    %631 = vmatpush1.msra.mxu0 0.0
    %632 = vmatprep.subr.mxu0 0.0
    %633 = vmatpush1.msra.mxu0 0.0
    %634 = vmatprep.subr.mxu0 0.0
    %635 = vmatpush1.msra.mxu0 0.0
    %636 = vmatprep.subr.mxu0 0.0
    %637 = vmatpush1.msra.mxu0 0.0
    %638 = vmatprep.subr.mxu0 0.0
    %639 = vmatpush1.msra.mxu0 0.0
    %640 = vmatprep.subr.mxu0 0.0
    %641 = vmatpush1.msra.mxu0 0.0
    %642 = vmatprep.subr.mxu0 0.0
    %643 = vmatpush1.msra.mxu0 0.0
    %644 = vmatprep.subr.mxu0 0.0
    %645 = vmatpush1.msra.mxu0 0.0
    %646 = vmatprep.subr.mxu0 0.0
    %647 = vmatpush1.msra.mxu0 0.0
    %648 = vmatprep.subr.mxu0 0.0
    %649 = vmatpush1.msra.mxu0 0.0
    %650 = vmatprep.subr.mxu0 0.0
    %651 = vmatpush1.msra.mxu0 0.0
    %652 = vmatprep.subr.mxu0 0.0
    %653 = vmatpush1.msra.mxu0 0.0
    %654 = vmatprep.subr.mxu0 0.0
    %655 = vmatpush1.msra.mxu0 0.0
    %656 = vmatprep.subr.mxu0 0.0
    %657 = vmatpush1.msra.mxu0 0.0
    %658 = vmatprep.subr.mxu0 0.0
    %659 = vmatpush1.msra.mxu0 0.0
    %660 = vmatprep.subr.mxu0 0.0
    %661 = vmatpush1.msra.mxu0 0.0
    %662 = vmatprep.subr.mxu0 0.0
    %663 = vmatpush1.msra.mxu0 0.0
    %664 = vmatprep.mubr.f32.mxu0 0.0
    %665 = vmatmul.mubr.f32.gmra.mrb[0].mxu0 %v598
    %v666 = vpop.f32.mrb[0].mxu0
    %v667 = vadd.f32 0.0, %v666
    %v668 = vpop.f32.mrb[0].mxu0
    %669 = vdwg.mxu0
    %v670 = vadd.f32 %v159, %v667
    %v671 = vxor.u32 %v670, 2147483648
    %v672 = vmul.f32 %v671, 1.442695
    %v673 = vpow.pop %v672
    %v674 = vadd.f32 %v673, 1.0
    %v675 = vrcp.pop %v674
    %v676 = vmul.f32 1.0, %v675
    %v677 = vadd.f32 %v667, %v260
    %679 = vrot.lane.b32.xlu0 %v677, 64
    %v680 = vpop.permute.xlu0 %679
    %v682 = vmul.f32 %v676, %v680
    %684 = vrot.lane.b32.xlu0 %v682, 64
    %v685 = vpop.permute.xlu0 %684
    %v687 = vadd.f32 %v159, %v685
    %v688 = vtanh.pop %v687
    %v689 = vsub.f32 1.0, %v676
    %691 = vrot.lane.b32.xlu0 %v688, 96
    %v692 = vpop.permute.xlu0 %691
    %v694 = vmul.f32 %v689, %v692
    %v695 = vmul.f32 %v676, %v593
    %v696 = vadd.f32 %v694, %v695
    %v697 = vtanh.pop %v696
    %699 = vrot.lane.b32.xlu0 %v696, 96
    %v700 = vpop.permute.xlu0 %699
    %v701 = vsel %vm178, %v700, 0
    %703 = vmatprep.subr.mxu0 0.0
    %704 = vmatpush1.msra.mxu0 %v28
    %705 = vmatprep.subr.mxu0 0.0
    %706 = vmatpush1.msra.mxu0 %v29
    %707 = vmatprep.subr.mxu0 0.0
    %708 = vmatpush1.msra.mxu0 %v30
    %709 = vmatprep.subr.mxu0 0.0
    %710 = vmatpush1.msra.mxu0 %v31
    %711 = vmatprep.subr.mxu0 0.0
    %712 = vmatpush1.msra.mxu0 0.0
    %713 = vmatprep.subr.mxu0 0.0
    %714 = vmatpush1.msra.mxu0 0.0
    %715 = vmatprep.subr.mxu0 0.0
    %716 = vmatpush1.msra.mxu0 0.0
    %717 = vmatprep.subr.mxu0 0.0
    %718 = vmatpush1.msra.mxu0 0.0
    %719 = vmatprep.subr.mxu0 0.0
    %720 = vmatpush1.msra.mxu0 0.0
    %721 = vmatprep.subr.mxu0 0.0
    %722 = vmatpush1.msra.mxu0 0.0
    %723 = vmatprep.subr.mxu0 0.0
    %724 = vmatpush1.msra.mxu0 0.0
    %725 = vmatprep.subr.mxu0 0.0
    %726 = vmatpush1.msra.mxu0 0.0
    %727 = vmatprep.subr.mxu0 0.0
    %728 = vmatpush1.msra.mxu0 0.0
    %729 = vmatprep.subr.mxu0 0.0
    %730 = vmatpush1.msra.mxu0 0.0
    %731 = vmatprep.subr.mxu0 0.0
    %732 = vmatpush1.msra.mxu0 0.0
    %733 = vmatprep.subr.mxu0 0.0
    %734 = vmatpush1.msra.mxu0 0.0
    %735 = vmatprep.subr.mxu0 0.0
    %736 = vmatpush1.msra.mxu0 0.0
    %737 = vmatprep.subr.mxu0 0.0
    %738 = vmatpush1.msra.mxu0 0.0
    %739 = vmatprep.subr.mxu0 0.0
    %740 = vmatpush1.msra.mxu0 0.0
    %741 = vmatprep.subr.mxu0 0.0
    %742 = vmatpush1.msra.mxu0 0.0
    %743 = vmatprep.subr.mxu0 0.0
    %744 = vmatpush1.msra.mxu0 0.0
    %745 = vmatprep.subr.mxu0 0.0
    %746 = vmatpush1.msra.mxu0 0.0
    %747 = vmatprep.subr.mxu0 0.0
    %748 = vmatpush1.msra.mxu0 0.0
    %749 = vmatprep.subr.mxu0 0.0
    %750 = vmatpush1.msra.mxu0 0.0
    %751 = vmatprep.subr.mxu0 0.0
    %752 = vmatpush1.msra.mxu0 0.0
    %753 = vmatprep.subr.mxu0 0.0
    %754 = vmatpush1.msra.mxu0 0.0
    %755 = vmatprep.subr.mxu0 0.0
    %756 = vmatpush1.msra.mxu0 0.0
    %757 = vmatprep.subr.mxu0 0.0
    %758 = vmatpush1.msra.mxu0 0.0
    %759 = vmatprep.subr.mxu0 0.0
    %760 = vmatpush1.msra.mxu0 0.0
    %761 = vmatprep.subr.mxu0 0.0
    %762 = vmatpush1.msra.mxu0 0.0
    %763 = vmatprep.subr.mxu0 0.0
    %764 = vmatpush1.msra.mxu0 0.0
    %765 = vmatprep.subr.mxu0 0.0
    %766 = vmatpush1.msra.mxu0 0.0
    %767 = vmatprep.mubr.f32.mxu0 0.0
    %768 = vmatmul.mubr.f32.gmra.mrb[0].mxu0 %v701
    %v769 = vpop.f32.mrb[0].mxu0
    %v770 = vadd.f32 0.0, %v769
    %v771 = vpop.f32.mrb[0].mxu0
    %772 = vdwg.mxu0
    %v773 = vadd.f32 %v164, %v770
    %v774 = vxor.u32 %v773, 2147483648
    %v775 = vmul.f32 %v774, 1.442695
    %v776 = vpow.pop %v775
    %v777 = vadd.f32 %v776, 1.0
    %v778 = vrcp.pop %v777
    %v779 = vmul.f32 1.0, %v778
    %v780 = vadd.f32 %v770, %v260
    %782 = vrot.lane.b32.xlu0 %v780, 64
    %v783 = vpop.permute.xlu0 %782
    %v785 = vmul.f32 %v779, %v783
    %787 = vrot.lane.b32.xlu0 %v785, 64
    %v788 = vpop.permute.xlu0 %787
    %v790 = vadd.f32 %v164, %v788
    %v791 = vtanh.pop %v790
    %v792 = vsub.f32 1.0, %v779
    %794 = vrot.lane.b32.xlu0 %v791, 96
    %v795 = vpop.permute.xlu0 %794
    %v797 = vmul.f32 %v792, %v795
    %v798 = vmul.f32 %v779, %v696
    %v799 = vadd.f32 %v797, %v798
    %v800 = vtanh.pop %v799
    %802 = vrot.lane.b32.xlu0 %v799, 96
    %v803 = vpop.permute.xlu0 %802
    %v804 = vsel %vm178, %v803, 0
    %806 = vmatprep.subr.mxu0 0.0
    %807 = vmatpush1.msra.mxu0 %v28
    %808 = vmatprep.subr.mxu0 0.0
    %809 = vmatpush1.msra.mxu0 %v29
    %810 = vmatprep.subr.mxu0 0.0
    %811 = vmatpush1.msra.mxu0 %v30
    %812 = vmatprep.subr.mxu0 0.0
    %813 = vmatpush1.msra.mxu0 %v31
    %814 = vmatprep.subr.mxu0 0.0
    %815 = vmatpush1.msra.mxu0 0.0
    %816 = vmatprep.subr.mxu0 0.0
    %817 = vmatpush1.msra.mxu0 0.0
    %818 = vmatprep.subr.mxu0 0.0
    %819 = vmatpush1.msra.mxu0 0.0
    %820 = vmatprep.subr.mxu0 0.0
    %821 = vmatpush1.msra.mxu0 0.0
    %822 = vmatprep.subr.mxu0 0.0
    %823 = vmatpush1.msra.mxu0 0.0
    %824 = vmatprep.subr.mxu0 0.0
    %825 = vmatpush1.msra.mxu0 0.0
    %826 = vmatprep.subr.mxu0 0.0
    %827 = vmatpush1.msra.mxu0 0.0
    %828 = vmatprep.subr.mxu0 0.0
    %829 = vmatpush1.msra.mxu0 0.0
    %830 = vmatprep.subr.mxu0 0.0
    %831 = vmatpush1.msra.mxu0 0.0
    %832 = vmatprep.subr.mxu0 0.0
    %833 = vmatpush1.msra.mxu0 0.0
    %834 = vmatprep.subr.mxu0 0.0
    %835 = vmatpush1.msra.mxu0 0.0
    %836 = vmatprep.subr.mxu0 0.0
    %837 = vmatpush1.msra.mxu0 0.0
    %838 = vmatprep.subr.mxu0 0.0
    %839 = vmatpush1.msra.mxu0 0.0
    %840 = vmatprep.subr.mxu0 0.0
    %841 = vmatpush1.msra.mxu0 0.0
    %842 = vmatprep.subr.mxu0 0.0
    %843 = vmatpush1.msra.mxu0 0.0
    %844 = vmatprep.subr.mxu0 0.0
    %845 = vmatpush1.msra.mxu0 0.0
    %846 = vmatprep.subr.mxu0 0.0
    %847 = vmatpush1.msra.mxu0 0.0
    %848 = vmatprep.subr.mxu0 0.0
    %849 = vmatpush1.msra.mxu0 0.0
    %850 = vmatprep.subr.mxu0 0.0
    %851 = vmatpush1.msra.mxu0 0.0
    %852 = vmatprep.subr.mxu0 0.0
    %853 = vmatpush1.msra.mxu0 0.0
    %854 = vmatprep.subr.mxu0 0.0
    %855 = vmatpush1.msra.mxu0 0.0
    %856 = vmatprep.subr.mxu0 0.0
    %857 = vmatpush1.msra.mxu0 0.0
    %858 = vmatprep.subr.mxu0 0.0
    %859 = vmatpush1.msra.mxu0 0.0
    %860 = vmatprep.subr.mxu0 0.0
    %861 = vmatpush1.msra.mxu0 0.0
    %862 = vmatprep.subr.mxu0 0.0
    %863 = vmatpush1.msra.mxu0 0.0
    %864 = vmatprep.subr.mxu0 0.0
    %865 = vmatpush1.msra.mxu0 0.0
    %866 = vmatprep.subr.mxu0 0.0
    %867 = vmatpush1.msra.mxu0 0.0
    %868 = vmatprep.subr.mxu0 0.0
    %869 = vmatpush1.msra.mxu0 0.0
    %870 = vmatprep.mubr.f32.mxu0 0.0
    %871 = vmatmul.mubr.f32.gmra.mrb[0].mxu0 %v804
    %v872 = vpop.f32.mrb[0].mxu0
    %v873 = vadd.f32 0.0, %v872
    %v874 = vpop.f32.mrb[0].mxu0
    %875 = vdwg.mxu0
    %v876 = vadd.f32 %v169, %v873
    %v877 = vxor.u32 %v876, 2147483648
    %v878 = vmul.f32 %v877, 1.442695
    %v879 = vpow.pop %v878
    %v880 = vadd.f32 %v879, 1.0
    %v881 = vrcp.pop %v880
    %v882 = vmul.f32 1.0, %v881
    %v883 = vadd.f32 %v873, %v260
    %885 = vrot.lane.b32.xlu0 %v883, 64
    %v886 = vpop.permute.xlu0 %885
    %v888 = vmul.f32 %v882, %v886
    %890 = vrot.lane.b32.xlu0 %v888, 64
    %v891 = vpop.permute.xlu0 %890
    %v893 = vadd.f32 %v169, %v891
    %v894 = vtanh.pop %v893
    %v895 = vsub.f32 1.0, %v882
    %897 = vrot.lane.b32.xlu0 %v894, 96
    %v898 = vpop.permute.xlu0 %897
    %v900 = vmul.f32 %v895, %v898
    %v901 = vmul.f32 %v882, %v799
    %v902 = vadd.f32 %v900, %v901
    %v903 = vtanh.pop %v902
    %905 = vrot.lane.b32.xlu0 %v902, 96
    %v906 = vpop.permute.xlu0 %905
    %v907 = vsel %vm178, %v906, 0
    %909 = vmatprep.subr.mxu0 0.0
    %910 = vmatpush1.msra.mxu0 %v28
    %911 = vmatprep.subr.mxu0 0.0
    %912 = vmatpush1.msra.mxu0 %v29
    %913 = vmatprep.subr.mxu0 0.0
    %914 = vmatpush1.msra.mxu0 %v30
    %915 = vmatprep.subr.mxu0 0.0
    %916 = vmatpush1.msra.mxu0 %v31
    %917 = vmatprep.subr.mxu0 0.0
    %918 = vmatpush1.msra.mxu0 0.0
    %919 = vmatprep.subr.mxu0 0.0
    %920 = vmatpush1.msra.mxu0 0.0
    %921 = vmatprep.subr.mxu0 0.0
    %922 = vmatpush1.msra.mxu0 0.0
    %923 = vmatprep.subr.mxu0 0.0
    %924 = vmatpush1.msra.mxu0 0.0
    %925 = vmatprep.subr.mxu0 0.0
    %926 = vmatpush1.msra.mxu0 0.0
    %927 = vmatprep.subr.mxu0 0.0
    %928 = vmatpush1.msra.mxu0 0.0
    %929 = vmatprep.subr.mxu0 0.0
    %930 = vmatpush1.msra.mxu0 0.0
    %931 = vmatprep.subr.mxu0 0.0
    %932 = vmatpush1.msra.mxu0 0.0
    %933 = vmatprep.subr.mxu0 0.0
    %934 = vmatpush1.msra.mxu0 0.0
    %935 = vmatprep.subr.mxu0 0.0
    %936 = vmatpush1.msra.mxu0 0.0
    %937 = vmatprep.subr.mxu0 0.0
    %938 = vmatpush1.msra.mxu0 0.0
    %939 = vmatprep.subr.mxu0 0.0
    %940 = vmatpush1.msra.mxu0 0.0
    %941 = vmatprep.subr.mxu0 0.0
    %942 = vmatpush1.msra.mxu0 0.0
    %943 = vmatprep.subr.mxu0 0.0
    %944 = vmatpush1.msra.mxu0 0.0
    %945 = vmatprep.subr.mxu0 0.0
    %946 = vmatpush1.msra.mxu0 0.0
    %947 = vmatprep.subr.mxu0 0.0
    %948 = vmatpush1.msra.mxu0 0.0
    %949 = vmatprep.subr.mxu0 0.0
    %950 = vmatpush1.msra.mxu0 0.0
    %951 = vmatprep.subr.mxu0 0.0
    %952 = vmatpush1.msra.mxu0 0.0
    %953 = vmatprep.subr.mxu0 0.0
    %954 = vmatpush1.msra.mxu0 0.0
    %955 = vmatprep.subr.mxu0 0.0
    %956 = vmatpush1.msra.mxu0 0.0
    %957 = vmatprep.subr.mxu0 0.0
    %958 = vmatpush1.msra.mxu0 0.0
    %959 = vmatprep.subr.mxu0 0.0
    %960 = vmatpush1.msra.mxu0 0.0
    %961 = vmatprep.subr.mxu0 0.0
    %962 = vmatpush1.msra.mxu0 0.0
    %963 = vmatprep.subr.mxu0 0.0
    %964 = vmatpush1.msra.mxu0 0.0
    %965 = vmatprep.subr.mxu0 0.0
    %966 = vmatpush1.msra.mxu0 0.0
    %967 = vmatprep.subr.mxu0 0.0
    %968 = vmatpush1.msra.mxu0 0.0
    %969 = vmatprep.subr.mxu0 0.0
    %970 = vmatpush1.msra.mxu0 0.0
    %971 = vmatprep.subr.mxu0 0.0
    %972 = vmatpush1.msra.mxu0 0.0
    %973 = vmatprep.mubr.f32.mxu0 0.0
    %974 = vmatmul.mubr.f32.gmra.mrb[0].mxu0 %v907
    %v975 = vpop.f32.mrb[0].mxu0
    %v976 = vadd.f32 0.0, %v975
    %v977 = vpop.f32.mrb[0].mxu0
    %978 = vdwg.mxu0
    %v979 = vadd.f32 %v174, %v976
    %v980 = vxor.u32 %v979, 2147483648
    %v981 = vmul.f32 %v980, 1.442695
    %v982 = vpow.pop %v981
    %v983 = vadd.f32 %v982, 1.0
    %v984 = vrcp.pop %v983
    %v985 = vmul.f32 1.0, %v984
    %v986 = vadd.f32 %v976, %v260
    %988 = vrot.lane.b32.xlu0 %v986, 64
    %v989 = vpop.permute.xlu0 %988
    %v991 = vmul.f32 %v985, %v989
    %993 = vrot.lane.b32.xlu0 %v991, 64
    %v994 = vpop.permute.xlu0 %993
    %v996 = vadd.f32 %v174, %v994
    %v997 = vtanh.pop %v996
    %v998 = vsub.f32 1.0, %v985
    %1000 = vrot.lane.b32.xlu0 %v997, 96
    %v1001 = vpop.permute.xlu0 %1000
    %v1003 = vmul.f32 %v998, %v1001
    %v1004 = vmul.f32 %v985, %v902
    %v1005 = vadd.f32 %v1003, %v1004
    %v1006 = vtanh.pop %v1005
    %1008 = vrot.lane.b32.xlu0 %v1005, 96
    %v1009 = vpop.permute.xlu0 %1008
    %1011 = vst.msk [vmem:[#allocation2] sm:$0xff] %vm178, %v1009
    %v1012 = vld [vmem:[%s4] sm:$0xff]
    %v1013 = vld [vmem:[%s4 + $0x8] sm:$0xff]
    %v1014 = vld [vmem:[%s4 + $0x10] sm:$0xff]
    %v1015 = vld [vmem:[%s4 + $0x18] sm:$0xff]
    %v1016 = vld [vmem:[%s5] sm:$0xff]
    %v1017 = vld [vmem:[%s5 + $0x8] sm:$0xff]
    %v1018 = vld [vmem:[%s5 + $0x10] sm:$0xff]
    %v1019 = vld [vmem:[%s5 + $0x18] sm:$0xff]
    %v1020 = vld [vmem:[%s5 + $0x20] sm:$0xff]
    %v1021 = vld [vmem:[%s5 + $0x28] sm:$0xff]
    %v1022 = vld [vmem:[%s5 + $0x30] sm:$0xff]
    %v1023 = vld [vmem:[%s5 + $0x38] sm:$0xff]
    %1032 = vrot.lane.b32.xlu0 %v285, 96
    %v1033 = vpop.permute.xlu0 %1032
    %1034 = vrot.lane.b32.xlu0 %v388, 96
    %v1035 = vpop.permute.xlu0 %1034
    %1036 = vrot.lane.b32.xlu0 %v491, 96
    %v1037 = vpop.permute.xlu0 %1036
    %1038 = vrot.lane.b32.xlu0 %v594, 96
    %v1039 = vpop.permute.xlu0 %1038
    %1040 = vrot.lane.b32.xlu0 %v697, 96
    %v1041 = vpop.permute.xlu0 %1040
    %1042 = vrot.lane.b32.xlu0 %v800, 96
    %v1043 = vpop.permute.xlu0 %1042
    %1044 = vrot.lane.b32.xlu0 %v903, 96
    %v1045 = vpop.permute.xlu0 %1044
    %1046 = vrot.lane.b32.xlu0 %v1006, 96
    %v1047 = vpop.permute.xlu0 %1046
    %v1048 = vsel %vm178, %v1033, 0
    %v1050 = vsel %vm178, %v1035, 0
    %v1052 = vsel %vm178, %v1037, 0
    %v1054 = vsel %vm178, %v1039, 0
    %v1056 = vsel %vm178, %v1041, 0
    %v1058 = vsel %vm178, %v1043, 0
    %v1060 = vsel %vm178, %v1045, 0
    %v1062 = vsel %vm178, %v1047, 0
    %1064 = vmatprep.subr.mxu0 0.0
    %1065 = vmatpush1.msra.mxu0 %v1012
    %1066 = vmatprep.subr.mxu0 0.0
    %1067 = vmatpush1.msra.mxu0 %v1013
    %1068 = vmatprep.subr.mxu0 0.0
    %1069 = vmatpush1.msra.mxu0 %v1014
    %1070 = vmatprep.subr.mxu0 0.0
    %1071 = vmatpush1.msra.mxu0 %v1015
    %1072 = vmatprep.subr.mxu0 0.0
    %1073 = vmatpush1.msra.mxu0 0.0
    %1074 = vmatprep.subr.mxu0 0.0
    %1075 = vmatpush1.msra.mxu0 0.0
    %1076 = vmatprep.subr.mxu0 0.0
    %1077 = vmatpush1.msra.mxu0 0.0
    %1078 = vmatprep.subr.mxu0 0.0
    %1079 = vmatpush1.msra.mxu0 0.0
    %1080 = vmatprep.subr.mxu0 0.0
    %1081 = vmatpush1.msra.mxu0 0.0
    %1082 = vmatprep.subr.mxu0 0.0
    %1083 = vmatpush1.msra.mxu0 0.0
    %1084 = vmatprep.subr.mxu0 0.0
    %1085 = vmatpush1.msra.mxu0 0.0
    %1086 = vmatprep.subr.mxu0 0.0
    %1087 = vmatpush1.msra.mxu0 0.0
    %1088 = vmatprep.subr.mxu0 0.0
    %1089 = vmatpush1.msra.mxu0 0.0
    %1090 = vmatprep.subr.mxu0 0.0
    %1091 = vmatpush1.msra.mxu0 0.0
    %1092 = vmatprep.subr.mxu0 0.0
    %1093 = vmatpush1.msra.mxu0 0.0
    %1094 = vmatprep.subr.mxu0 0.0
    %1095 = vmatpush1.msra.mxu0 0.0
    %1096 = vmatprep.subr.mxu0 0.0
    %1097 = vmatpush1.msra.mxu0 0.0
    %1098 = vmatprep.subr.mxu0 0.0
    %1099 = vmatpush1.msra.mxu0 0.0
    %1100 = vmatprep.subr.mxu0 0.0
    %1101 = vmatpush1.msra.mxu0 0.0
    %1102 = vmatprep.subr.mxu0 0.0
    %1103 = vmatpush1.msra.mxu0 0.0
    %1104 = vmatprep.subr.mxu0 0.0
    %1105 = vmatpush1.msra.mxu0 0.0
    %1106 = vmatprep.subr.mxu0 0.0
    %1107 = vmatpush1.msra.mxu0 0.0
    %1108 = vmatprep.subr.mxu0 0.0
    %1109 = vmatpush1.msra.mxu0 0.0
    %1110 = vmatprep.subr.mxu0 0.0
    %1111 = vmatpush1.msra.mxu0 0.0
    %1112 = vmatprep.subr.mxu0 0.0
    %1113 = vmatpush1.msra.mxu0 0.0
    %1114 = vmatprep.subr.mxu0 0.0
    %1115 = vmatpush1.msra.mxu0 0.0
    %1116 = vmatprep.subr.mxu0 0.0
    %1117 = vmatpush1.msra.mxu0 0.0
    %1118 = vmatprep.subr.mxu0 0.0
    %1119 = vmatpush1.msra.mxu0 0.0
    %1120 = vmatprep.subr.mxu0 0.0
    %1121 = vmatpush1.msra.mxu0 0.0
    %1122 = vmatprep.subr.mxu0 0.0
    %1123 = vmatpush1.msra.mxu0 0.0
    %1124 = vmatprep.subr.mxu0 0.0
    %1125 = vmatpush1.msra.mxu0 0.0
    %1126 = vmatprep.subr.mxu0 0.0
    %1127 = vmatpush1.msra.mxu0 0.0
    %1128 = vmatprep.mubr.f32.mxu0 0.0
    %1129 = vmatmul.mubr.f32.gmra.mrb[0].mxu0 %v1048
    %v1130 = vpop.f32.mrb[0].mxu0
    %v1131 = vadd.f32 %v1016, %v1130
    %v1132 = vpop.f32.mrb[0].mxu0
    %1133 = vmatprep.mubr.f32.mxu0 0.0
    %1134 = vmatmul.mubr.f32.gmra.mrb[0].mxu0 %v1050
    %v1135 = vpop.f32.mrb[0].mxu0
    %v1136 = vadd.f32 %v1017, %v1135
    %v1137 = vpop.f32.mrb[0].mxu0
    %1138 = vmatprep.mubr.f32.mxu0 0.0
    %1139 = vmatmul.mubr.f32.gmra.mrb[0].mxu0 %v1052
    %v1140 = vpop.f32.mrb[0].mxu0
    %v1141 = vadd.f32 %v1018, %v1140
    %v1142 = vpop.f32.mrb[0].mxu0
    %1143 = vmatprep.mubr.f32.mxu0 0.0
    %1144 = vmatmul.mubr.f32.gmra.mrb[0].mxu0 %v1054
    %v1145 = vpop.f32.mrb[0].mxu0
    %v1146 = vadd.f32 %v1019, %v1145
    %v1147 = vpop.f32.mrb[0].mxu0
    %1148 = vmatprep.mubr.f32.mxu0 0.0
    %1149 = vmatmul.mubr.f32.gmra.mrb[0].mxu0 %v1056
    %v1150 = vpop.f32.mrb[0].mxu0
    %v1151 = vadd.f32 %v1020, %v1150
    %v1152 = vpop.f32.mrb[0].mxu0
    %1153 = vmatprep.mubr.f32.mxu0 0.0
    %1154 = vmatmul.mubr.f32.gmra.mrb[0].mxu0 %v1058
    %v1155 = vpop.f32.mrb[0].mxu0
    %v1156 = vadd.f32 %v1021, %v1155
    %v1157 = vpop.f32.mrb[0].mxu0
    %1158 = vmatprep.mubr.f32.mxu0 0.0
    %1159 = vmatmul.mubr.f32.gmra.mrb[0].mxu0 %v1060
    %v1160 = vpop.f32.mrb[0].mxu0
    %v1161 = vadd.f32 %v1022, %v1160
    %v1162 = vpop.f32.mrb[0].mxu0
    %1163 = vmatprep.mubr.f32.mxu0 0.0
    %1164 = vmatmul.mubr.f32.gmra.mrb[0].mxu0 %v1062
    %v1165 = vpop.f32.mrb[0].mxu0
    %v1166 = vadd.f32 %v1023, %v1165
    %v1167 = vpop.f32.mrb[0].mxu0
    %1168 = vdwg.mxu0
    %1169 = vst.msk [vmem:[%s6] sm:$0xff] %vm47, %v1131
    %1170 = vst.msk [vmem:[%s6 + $0x8] sm:$0xff] %vm47, %v1136
    %1171 = vst.msk [vmem:[%s6 + $0x10] sm:$0xff] %vm47, %v1141
    %1172 = vst.msk [vmem:[%s6 + $0x18] sm:$0xff] %vm47, %v1146
    %1173 = vst.msk [vmem:[%s6 + $0x20] sm:$0xff] %vm47, %v1151
    %1174 = vst.msk [vmem:[%s6 + $0x28] sm:$0xff] %vm47, %v1156
    %1175 = vst.msk [vmem:[%s6 + $0x30] sm:$0xff] %vm47, %v1161
    %1176 = vst.msk [vmem:[%s6 + $0x38] sm:$0xff] %vm47, %v1166
    // Predicated region
    $region26: #{tpu_custom_call.1} parent=1 // pred_check
      _
    $region27: #{tpu_custom_call.1} parent=1 // pred_check_branch
      %1178 = sbr.rel (0) target = $region29
    $region28: #{tpu_custom_call.1} parent=1 // pred_region
      _
    $region29: #{tpu_custom_call.1} parent=1 // pred_fallthru
      _
    // Predicated region
    $region30: #{tpu_custom_call.1} parent=1 // pred_check
      _
    $region31: #{tpu_custom_call.1} parent=1 // pred_check_branch
      %1180 = sbr.rel (0) target = $region33
    $region32: #{tpu_custom_call.1} parent=1 // pred_region
      %s1182 = ssub.s32 128, 128
      %1183 = vsyncadd [#allocation3], %s1182
      %s1185 = sshll.u32 [#allocation2], 4
      %s1186 = int_to_ptr.vmem [resolvable:$true] %s1185
      %1188 = dma.vmem_to_hbm [thread:$0]  %s1186, 128, %s7, [#allocation3]
    $region33: #{tpu_custom_call.1} parent=1 // pred_fallthru
      _
    // Predicated region
    $region34: #{tpu_custom_call.1} parent=1 // pred_check
      _
    $region35: #{tpu_custom_call.1} parent=1 // pred_check_branch
      %1190 = sbr.rel (0) target = $region37
    $region36: #{tpu_custom_call.1} parent=1 // pred_region
      _
    $region37: #{tpu_custom_call.1} parent=1 // pred_fallthru
      _
    // Predicated region
    $region38: #{tpu_custom_call.1} parent=1 // pred_check
      _
    $region39: #{tpu_custom_call.1} parent=1 // pred_check_branch
      %1192 = sbr.rel (0) target = $region41
    $region40: #{tpu_custom_call.1} parent=1 // pred_region
      %1193 = dma.done [#allocation3], 128
    $region41: #{tpu_custom_call.1} parent=1 // pred_fallthru
      _
    %1194 = vsyncpa [#allocation3], 1

</llo_original>
